<compile_context>
chip_gen: v7x
topology: tpu7x:2x2x1
jax: 0.10.0
libtpu: 0.0.40
codegen_flags: <defaults>
</compile_context>

<pallas_src>
import functools

import jax
import jax.numpy as jnp
from jax.experimental import pallas as pl
from jax.experimental.pallas import tpu as pltpu


def _round_up(x, m):
    return (x + m - 1) // m * m


def _fcn_kan_kernel(x_ref, w1_ref, b1_ref, w2_ref, b2_ref, out_ref, *,
                    n_sin, silu_in_bf16):
    """One grid step = (one batch tile) x (one dim_in group).

    x_ref  : (G, BT)              f32  (this group's input rows, batch on lanes)
    w1_ref : (G*DH, F*G)          bf16 (block-diagonal W1 for the group)
    b1_ref : (G*DH, 1)            f32  (B1 for the group, added post-matmul)
    w2_ref : (dim_out_pad, G*DH)  bf16 (W2 folded with hidden & in-group sums)
    b2_ref : (dim_out_pad, 1)     f32  (sum_i B2, added once)
    out_ref: (dim_out_pad, BT)    f32  (resident accumulator across group axis)
    """
    g = pl.program_id(1)

    @pl.when(g == 0)
    def _():
        # Initialize the resident accumulator with the (once-only) output bias.
        out_ref[...] = jnp.zeros_like(out_ref) + b2_ref[...]

    xg = x_ref[...]                                                 # (G, BT)

    # Sinusoidal embedding: single sin / single cos over (n_sin*G, BT) so the
    # EUP runs at full vreg occupancy even when the group is only a few rows.
    scaled = jnp.concatenate([(2.0 ** k) * xg for k in range(n_sin)], axis=0)
    feat = jnp.concatenate([xg, jnp.sin(scaled), jnp.cos(scaled)], axis=0)
    feat = feat.astype(jnp.bfloat16)                                # (F*G, BT)

    # First linear for every (i-in-group, j, h) at once; B1 stays in f32.
    h = jnp.dot(w1_ref[...], feat, preferred_element_type=jnp.float32)
    h = h + b1_ref[...]                                             # (G*DH, BT)

    # SiLU via the cheap EUP reciprocal path.
    if silu_in_bf16:
        # Packed bf16 VPU/EUP (beneficial on v6e/v7x; do NOT enable on v5e).
        hb = h.astype(jnp.bfloat16)
        s = (hb * pl.reciprocal(1.0 + jnp.exp(-hb), approx=True)).astype(jnp.bfloat16)
    else:
        s = (h * pl.reciprocal(1.0 + jnp.exp(-h), approx=True)).astype(jnp.bfloat16)

    # Second linear + hidden reduction + in-group dim_in reduction, accumulated
    # in f32 into the resident output block.
    out_ref[...] += jnp.dot(w2_ref[...], s, preferred_element_type=jnp.float32)


def pack_params(W1, W2, B1, B2, n_sin, *, max_group_rows=2048, max_group_k=256):
    """Repack FCNKANLayer parameters for the Pallas kernel.

    Hoisted out of the forward path — run once per weight update.
    W1: (dim_in, dim_out, hidden, 1+2*n_sin); W2: (dim_in, dim_out, 1, hidden);
    B1: (dim_in, dim_out, hidden); B2: (dim_in, dim_out, 1).
    """
    dim_in, dim_out, hidden, feat_dim = W1.shape
    assert feat_dim == 1 + 2 * n_sin
    DH = dim_out * hidden

    # Group size over dim_in: large enough to keep the matmul-1 K dim busy,
    # small enough that (a) per-step f32 intermediates stay bounded and
    # (b) the block-diagonal W1 stays within roughly one MXU K tile.
    G = max(1, min(dim_in,
                   max(1, max_group_rows // DH),
                   max(1, max_group_k // feat_dim)))
    NG = -(-dim_in // G)
    dim_in_p = NG * G
    dim_out_pad = _round_up(dim_out, 8)
    pad_i = dim_in_p - dim_in

    f32 = jnp.float32
    W1p = jnp.pad(W1.astype(f32), ((0, pad_i), (0, 0), (0, 0), (0, 0)))
    W2p = jnp.pad(W2.astype(f32), ((0, pad_i), (0, 0), (0, 0), (0, 0)))
    B1p = jnp.pad(B1.astype(f32), ((0, pad_i), (0, 0), (0, 0)))

    # Block-diagonal W1 per group.
    #   rows: (member gi, j, h) -> gi*DH + j*hidden + h
    #   cols: (feature f, member gi') -> f*G + gi', nonzero only if gi == gi'
    W1r = W1p.reshape(NG, G, DH, feat_dim)
    eye_g = jnp.eye(G, dtype=f32)
    w1pack = (jnp.einsum("ngkf,gp->ngkfp", W1r, eye_g)
              .reshape(NG, G * DH, feat_dim * G).astype(jnp.bfloat16))

    b1pack = B1p.reshape(NG, G * DH, 1)                              # f32

    # W2 folded with the hidden segment-sum and the within-group dim_in sum.
    W2r = W2p[:, :, 0, :].reshape(NG, G, dim_out, hidden)
    eye_o = jnp.eye(dim_out_pad, dim_out, dtype=f32)
    w2pack = (jnp.einsum("ngjh,pj->npgjh", W2r, eye_o)
              .reshape(NG, dim_out_pad, G * DH).astype(jnp.bfloat16))

    # sum_i B2 (added once at group 0; padded output rows stay zero).
    b2sum = B2[:, :, 0].sum(axis=0).astype(f32)
    b2col = jnp.zeros((dim_out_pad, 1), f32).at[:dim_out, 0].set(b2sum)

    return dict(w1=w1pack, b1=b1pack, w2=w2pack, b2=b2col,
                n_sin=int(n_sin), dim_in=dim_in, dim_out=dim_out,
                dim_out_pad=dim_out_pad, G=G, NG=NG, DH=DH, F=feat_dim)


def fcn_kan_forward_packed(x, packed, *, batch_tile=512, silu_in_bf16=False,
                           vmem_budget_bytes=24 * 1024 * 1024):
    """x: (batch, dim_in) -> (batch, dim_out) float32, using packed params."""
    batch, dim_in = x.shape
    assert dim_in == packed["dim_in"]
    G, NG, DH, F = packed["G"], packed["NG"], packed["DH"], packed["F"]
    n_sin = packed["n_sin"]
    dim_out, dim_out_pad = packed["dim_out"], packed["dim_out_pad"]
    dim_in_p = NG * G

    # --- batch tiling: biggest lane-aligned tile that fits the VMEM budget ---
    bt = min(batch_tile, _round_up(batch, 128))

    def _working_set(bt_):
        h_bytes = G * DH * bt_ * 4                       # matmul-1 output (f32)
        s_bytes = G * DH * bt_ * (4 + 2)                 # SiLU f32 + bf16 copy
        feat_bytes = F * G * bt_ * (4 + 2)
        x_blk = G * bt_ * 4
        w1_blk = G * DH * F * G * 2
        b1_blk = G * DH * 4
        w2_blk = dim_out_pad * G * DH * 2
        out_blk = dim_out_pad * bt_ * 4
        # pipelined inputs are double-buffered
        return (2 * (x_blk + w1_blk + b1_blk + w2_blk)
                + out_blk + h_bytes + s_bytes + feat_bytes)

    while bt > 128 and _working_set(bt) > vmem_budget_bytes:
        bt //= 2
    batch_pad = _round_up(batch, bt)
    n_bt = batch_pad // bt

    # x -> (NG, G, batch_pad): batch on the lane axis, grouped dim_in leading.
    # TODO(synk): move this small transpose into the kernel if the extra host-side
    # pass over x ever shows up in profiles (x is tiny vs. per-element compute).
    xT = jnp.pad(x.astype(jnp.float32),
                 ((0, batch_pad - batch), (0, dim_in_p - dim_in))).T
    xg = xT.reshape(NG, G, batch_pad)

    grid_spec = pltpu.PrefetchScalarGridSpec(
        num_scalar_prefetch=0,
        grid=(n_bt, NG),                                 # (batch tiles, groups)
        in_specs=[
            pl.BlockSpec((None, G, bt), lambda b, g: (g, 0, b)),
            pl.BlockSpec((None, G * DH, F * G), lambda b, g: (g, 0, 0)),
            pl.BlockSpec((None, G * DH, 1), lambda b, g: (g, 0, 0)),
            pl.BlockSpec((None, dim_out_pad, G * DH), lambda b, g: (g, 0, 0)),
            pl.BlockSpec((dim_out_pad, 1), lambda b, g: (0, 0)),
        ],
        out_specs=pl.BlockSpec((dim_out_pad, bt), lambda b, g: (0, b)),
    )

    # Advisory cost estimate for XLA's scheduler.
    flops = 2 * NG * G * DH * (F * G + dim_out_pad) * batch_pad
    transcendentals = batch_pad * (2 * n_sin * dim_in_p + 2 * dim_in_p * DH)
    bytes_accessed = (xg.size * 4 + dim_out_pad * batch_pad * 4
                      + n_bt * (packed["w1"].size * 2 + packed["w2"].size * 2
                                + packed["b1"].size * 4)
                      + packed["b2"].size * 4)
    cost = pl.CostEstimate(flops=int(flops),
                           transcendentals=int(transcendentals),
                           bytes_accessed=int(bytes_accessed))

    # Explicit VMEM limit: above v5e's 16 MiB default, below v7x's 64 MiB physical.
    vmem_limit = int(min(max(2 * _working_set(bt), 16 * 1024 * 1024),
                         56 * 1024 * 1024))

    kernel = functools.partial(_fcn_kan_kernel, n_sin=n_sin,
                               silu_in_bf16=silu_in_bf16)
    outT = pl.pallas_call(
        kernel,
        out_shape=jax.ShapeDtypeStruct((dim_out_pad, batch_pad), jnp.float32),
        grid_spec=grid_spec,
        compiler_params=pltpu.CompilerParams(
            dimension_semantics=("parallel", "arbitrary"),
            vmem_limit_bytes=vmem_limit),
        cost_estimate=cost,
    )(xg, packed["w1"], packed["b1"], packed["w2"], packed["b2"])

    return outT[:dim_out, :batch].T                                  # (batch, dim_out)


def fcn_kan_forward(x, W1, W2, B1, B2, n_sin, **kwargs):
    """Convenience wrapper (packs on every call). Prefer pack_params() once +
    fcn_kan_forward_packed() in real use."""
    return fcn_kan_forward_packed(x, pack_params(W1, W2, B1, B2, n_sin), **kwargs)


def fcn_kan_reference(x, W1, W2, B1, B2, n_sin):
    """Pure-JAX f32 reference mirroring the PyTorch vmap/phi semantics."""
    omega = 2.0 ** jnp.arange(n_sin, dtype=jnp.float32)               # (n_sin,)
    xi = x[:, :, None]                                                # (batch, dim_in, 1)
    ox = xi * omega                                                   # (batch, dim_in, n_sin)
    feat = jnp.concatenate([xi, jnp.sin(ox), jnp.cos(ox)], axis=-1)   # (batch, dim_in, F)
    h = jnp.einsum("bif,iohf->bioh", feat, W1) + B1[None]             # (batch, dim_in, dim_out, hidden)
    s = h * jax.nn.sigmoid(h)
    out = jnp.einsum("bioh,ioh->bio", s, W2[:, :, 0, :]) + B2[None, :, :, 0]
    return out.sum(axis=1)                                            # (batch, dim_out)


def init_params(key, dim_in, dim_out, fcn_hidden, fcn_n_sin):
    """Synthetic init mirroring the module's __init__ (xavier_normal_ for W1/W2,
    zeros for B1/B2), using PyTorch's fan-in/out convention for >2-D tensors."""
    feat_dim = 1 + 2 * fcn_n_sin
    k1, k2 = jax.random.split(key)
    rf1 = fcn_hidden * feat_dim
    std1 = (2.0 / (dim_out * rf1 + dim_in * rf1)) ** 0.5
    W1 = std1 * jax.random.normal(k1, (dim_in, dim_out, fcn_hidden, feat_dim), jnp.float32)
    rf2 = 1 * fcn_hidden
    std2 = (2.0 / (dim_out * rf2 + dim_in * rf2)) ** 0.5
    W2 = std2 * jax.random.normal(k2, (dim_in, dim_out, 1, fcn_hidden), jnp.float32)
    B1 = jnp.zeros((dim_in, dim_out, fcn_hidden), jnp.float32)
    B2 = jnp.zeros((dim_in, dim_out, 1), jnp.float32)
    return W1, W2, B1, B2


if __name__ == "__main__":
    batch, dim_in, dim_out = 8, 4, 8
    fcn_hidden, fcn_n_sin = 32, 3

    key = jax.random.PRNGKey(0)
    kp, kx = jax.random.split(key)
    W1, W2, B1, B2 = init_params(kp, dim_in, dim_out, fcn_hidden, fcn_n_sin)
    x = jax.random.normal(kx, (batch, dim_in), jnp.float32)

    packed = pack_params(W1, W2, B1, B2, fcn_n_sin)   # once per weight update
    out = fcn_kan_forward_packed(x, packed)
    out = jax.block_until_ready(out)

    ref = fcn_kan_reference(x, W1, W2, B1, B2, fcn_n_sin)
    assert out.shape == (batch, dim_out)
    # bf16 matmul operands + approx-reciprocal SiLU with f32 accumulation.
    assert jnp.allclose(out, ref, atol=5e-3, rtol=5e-2), (out, ref)

    print("KERNEL_OK")
</pallas_src>

<mosaic_0001>
module attributes {stable_mosaic.version = 11 : i64} {
  func.func @_fcn_kan_kernel(%arg0: i32, %arg1: i32, %arg2: memref<1x4x128xf32, #tpu.memory_space<vmem>>, %arg3: memref<1x1024x28xbf16, #tpu.memory_space<vmem>>, %arg4: memref<1x1024x1xf32, #tpu.memory_space<vmem>>, %arg5: memref<1x8x1024xbf16, #tpu.memory_space<vmem>>, %arg6: memref<8x1xf32, #tpu.memory_space<vmem>>, %arg7: memref<8x128xf32, #tpu.memory_space<vmem>>) attributes {dimension_semantics = [#tpu.dimension_semantics<parallel>, #tpu.dimension_semantics<arbitrary>], iteration_bounds = array<i64: 1, 1>, scalar_prefetch = 0 : i64, scratch_operands = 0 : i64, tpu.core_type = #tpu.core_type<tc>, window_params = [{transform_indices = @transform_0, window_bounds = array<i64: 1, 4, 128>}, {transform_indices = @transform_1, window_bounds = array<i64: 1, 1024, 28>}, {transform_indices = @transform_2, window_bounds = array<i64: 1, 1024, 1>}, {transform_indices = @transform_3, window_bounds = array<i64: 1, 8, 1024>}, {pipeline_mode = #tpu.pipeline_mode<synchronous>, transform_indices = @transform_4, window_bounds = array<i64: 8, 1>}, {transform_indices = @transform_5, window_bounds = array<i64: 8, 128>}]} {
    %c0_i32 = arith.constant 0 : i32
    %0 = arith.cmpi eq, %arg1, %c0_i32 : i32
    %1 = arith.extui %0 : i1 to i32
    %c0_i32_0 = arith.constant 0 : i32
    %2 = arith.cmpi ne, %1, %c0_i32_0 : i32
    scf.if %2 {
      %cst_22 = arith.constant 0.000000e+00 : f32
      %37 = vector.broadcast %cst_22 : f32 to vector<8x128xf32>
      %c0_23 = arith.constant 0 : index
      %c0_24 = arith.constant 0 : index
      %38 = vector.load %arg6[%c0_23, %c0_24] : memref<8x1xf32, #tpu.memory_space<vmem>>, vector<8x1xf32>
      %39 = vector.broadcast %38 : vector<8x1xf32> to vector<8x128xf32>
      %40 = arith.addf %37, %39 : vector<8x128xf32>
      %c0_25 = arith.constant 0 : index
      %c0_26 = arith.constant 0 : index
      %41 = vector.load %arg7[%c0_25, %c0_26] : memref<8x128xf32, #tpu.memory_space<vmem>>, vector<8x128xf32>
      tpu.vector_store %arg7[%c0_25, %c0_26], %40 {strides = array<i32>} : memref<8x128xf32, #tpu.memory_space<vmem>>, vector<8x128xf32>,
    } else {
    }
    %c0 = arith.constant 0 : index
    %c0_1 = arith.constant 0 : index
    %c0_2 = arith.constant 0 : index
    %3 = vector.load %arg2[%c0, %c0_1, %c0_2] : memref<1x4x128xf32, #tpu.memory_space<vmem>>, vector<1x4x128xf32>
    %4 = vector.shape_cast %3 : vector<1x4x128xf32> to vector<4x128xf32>
    %cst = arith.constant 1.000000e+00 : f32
    %5 = vector.broadcast %cst : f32 to vector<4x128xf32>
    %6 = arith.mulf %5, %4 : vector<4x128xf32>
    %cst_3 = arith.constant 2.000000e+00 : f32
    %7 = vector.broadcast %cst_3 : f32 to vector<4x128xf32>
    %8 = arith.mulf %7, %4 : vector<4x128xf32>
    %cst_4 = arith.constant 4.000000e+00 : f32
    %9 = vector.broadcast %cst_4 : f32 to vector<4x128xf32>
    %10 = arith.mulf %9, %4 : vector<4x128xf32>
    %11 = tpu.concatenate %6, %8, %10 in 0 : vector<4x128xf32>, vector<4x128xf32>, vector<4x128xf32> -> vector<12x128xf32>
    %12 = math.sin %11 : vector<12x128xf32>
    %13 = math.cos %11 : vector<12x128xf32>
    %14 = tpu.concatenate %4, %12, %13 in 0 : vector<4x128xf32>, vector<12x128xf32>, vector<12x128xf32> -> vector<28x128xf32>
    %15 = arith.truncf %14 : vector<28x128xf32> to vector<28x128xbf16>
    %c0_5 = arith.constant 0 : index
    %c0_6 = arith.constant 0 : index
    %c0_7 = arith.constant 0 : index
    %16 = vector.load %arg3[%c0_5, %c0_6, %c0_7] : memref<1x1024x28xbf16, #tpu.memory_space<vmem>>, vector<1x1024x28xbf16>
    %17 = vector.shape_cast %16 : vector<1x1024x28xbf16> to vector<1024x28xbf16>
    %cst_8 = arith.constant dense<0.000000e+00> : vector<1024x128xf32>
    %18 = tpu.matmul %17, %15, %cst_8 {dimension_numbers = #tpu.dot_dimension_numbers<[1], [0], [0], [1], [0, 0, 1, 1], [], []>} : vector<1024x28xbf16>, vector<28x128xbf16>, vector<1024x128xf32> -> vector<1024x128xf32>
    %c0_9 = arith.constant 0 : index
    %c0_10 = arith.constant 0 : index
    %c0_11 = arith.constant 0 : index
    %19 = vector.load %arg4[%c0_9, %c0_10, %c0_11] : memref<1x1024x1xf32, #tpu.memory_space<vmem>>, vector<1x1024x1xf32>
    %20 = vector.shape_cast %19 : vector<1x1024x1xf32> to vector<1024x1xf32>
    %21 = vector.broadcast %20 : vector<1024x1xf32> to vector<1024x128xf32>
    %22 = arith.addf %18, %21 : vector<1024x128xf32>
    %cst_12 = arith.constant 0.000000e+00 : f32
    %23 = vector.broadcast %cst_12 : f32 to vector<1024x128xf32>
    %24 = arith.subf %23, %22 : vector<1024x128xf32>
    %25 = math.exp %24 : vector<1024x128xf32>
    %cst_13 = arith.constant 1.000000e+00 : f32
    %26 = vector.broadcast %cst_13 : f32 to vector<1024x128xf32>
    %27 = arith.addf %26, %25 : vector<1024x128xf32>
    %28 = tpu.reciprocal %27 {approx = true} : vector<1024x128xf32> -> vector<1024x128xf32>
    %29 = arith.mulf %22, %28 : vector<1024x128xf32>
    %30 = arith.truncf %29 : vector<1024x128xf32> to vector<1024x128xbf16>
    %c0_14 = arith.constant 0 : index
    %c0_15 = arith.constant 0 : index
    %31 = vector.load %arg7[%c0_14, %c0_15] : memref<8x128xf32, #tpu.memory_space<vmem>>, vector<8x128xf32>
    %c0_16 = arith.constant 0 : index
    %c0_17 = arith.constant 0 : index
    %c0_18 = arith.constant 0 : index
    %32 = vector.load %arg5[%c0_16, %c0_17, %c0_18] : memref<1x8x1024xbf16, #tpu.memory_space<vmem>>, vector<1x8x1024xbf16>
    %33 = vector.shape_cast %32 : vector<1x8x1024xbf16> to vector<8x1024xbf16>
    %cst_19 = arith.constant dense<0.000000e+00> : vector<8x128xf32>
    %34 = tpu.matmul %33, %30, %cst_19 {dimension_numbers = #tpu.dot_dimension_numbers<[1], [0], [0], [1], [0, 0, 1, 1], [], []>} : vector<8x1024xbf16>, vector<1024x128xbf16>, vector<8x128xf32> -> vector<8x128xf32>
    %35 = arith.addf %31, %34 : vector<8x128xf32>
    %c0_20 = arith.constant 0 : index
    %c0_21 = arith.constant 0 : index
    %36 = vector.load %arg7[%c0_20, %c0_21] : memref<8x128xf32, #tpu.memory_space<vmem>>, vector<8x128xf32>
    tpu.vector_store %arg7[%c0_20, %c0_21], %35 {strides = array<i32>} : memref<8x128xf32, #tpu.memory_space<vmem>>, vector<8x128xf32>,
    return
  }
  func.func @transform_0(%arg0: i32, %arg1: i32) -> (i32, i32, i32) {
    %c0_i32 = arith.constant 0 : i32
    %c0_i32_0 = arith.constant 0 : i32
    return %arg1, %c0_i32, %arg0 : i32, i32, i32
  }
  func.func @transform_1(%arg0: i32, %arg1: i32) -> (i32, i32, i32) {
    %c0_i32 = arith.constant 0 : i32
    %c0_i32_0 = arith.constant 0 : i32
    %c0_i32_1 = arith.constant 0 : i32
    return %arg1, %c0_i32, %c0_i32_0 : i32, i32, i32
  }
  func.func @transform_2(%arg0: i32, %arg1: i32) -> (i32, i32, i32) {
    %c0_i32 = arith.constant 0 : i32
    %c0_i32_0 = arith.constant 0 : i32
    %c0_i32_1 = arith.constant 0 : i32
    return %arg1, %c0_i32, %c0_i32_0 : i32, i32, i32
  }
  func.func @transform_3(%arg0: i32, %arg1: i32) -> (i32, i32, i32) {
    %c0_i32 = arith.constant 0 : i32
    %c0_i32_0 = arith.constant 0 : i32
    %c0_i32_1 = arith.constant 0 : i32
    return %arg1, %c0_i32, %c0_i32_0 : i32, i32, i32
  }
  func.func @transform_4(%arg0: i32, %arg1: i32) -> (i32, i32) {
    %c0_i32 = arith.constant 0 : i32
    %c0_i32_0 = arith.constant 0 : i32
    %c0_i32_1 = arith.constant 0 : i32
    return %c0_i32, %c0_i32_0 : i32, i32
  }
  func.func @transform_5(%arg0: i32, %arg1: i32) -> (i32, i32) {
    %c0_i32 = arith.constant 0 : i32
    %c0_i32_0 = arith.constant 0 : i32
    return %c0_i32, %arg0 : i32, i32
  }
}

</mosaic_0001>

<llo_original>
// kernel: tpu_custom_call.1
$region0: #{tpu_custom_call.1}
  #allocation0 [shape = 'u32[]', space=smem, size = 0x4, offset = 0x4, fixed_abs, tag = 'smem constant byte address 0x4 - core index']
  #allocation1 [shape = 'u32[144,128]{1,0:T(1,128)}', space=vmem, size = 0x12000, scoped, tag = 'internal scratch']
  %s0 = inlined_call_operand.vmem [shape: f32[1,4,128], index: 0, kind: input, shape index: {}]
  %s1 = inlined_call_operand.vmem [shape: bf16[1,1024,28], index: 1, kind: input, shape index: {}]
  %s2 = inlined_call_operand.vmem [shape: f32[1,1024,1], index: 2, kind: input, shape index: {}]
  %s3 = inlined_call_operand.vmem [shape: bf16[1,8,1024], index: 3, kind: input, shape index: {}]
  %s4 = inlined_call_operand.vmem [shape: f32[8,1], index: 4, kind: input, shape index: {}]
  %s5 = inlined_call_operand.hbm [shape: f32[8,128], index: 5, kind: output, shape index: {}]
  %s6 = sld [smem:[#allocation0]]
  $region34: #{tpu_custom_call.1} parent=0
    _
  %s8 = ssub.s32 1, %s6
  %s9 = scalar_select 0, %s8, %s6
  $region1: #{tpu_custom_call.1} parent=0
    #allocation2 [shape = 'u8[4096]{0}', space=vmem, size = 0x1000, scoped, tag = 'output window, operand 0, single buffered']
    #allocation3 [shape = 's32[1]{0}', space=sflag, size = 0x4, scoped, tag = 'scoped memory for tpu_custom_call.1']
    %10 = vsyncpa [#allocation3], 0
    // Predicated region
    $region2: #{tpu_custom_call.1} parent=1 // pred_check
      _
    $region3: #{tpu_custom_call.1} parent=1 // pred_check_branch
      %12 = sbr.rel (0) target = $region5
    $region4: #{tpu_custom_call.1} parent=1 // pred_region
      _
    $region5: #{tpu_custom_call.1} parent=1 // pred_fallthru
      _
    // Predicated region
    $region6: #{tpu_custom_call.1} parent=1 // pred_check
      _
    $region7: #{tpu_custom_call.1} parent=1 // pred_check_branch
      %14 = sbr.rel (0) target = $region9
    $region8: #{tpu_custom_call.1} parent=1 // pred_region
      _
    $region9: #{tpu_custom_call.1} parent=1 // pred_fallthru
      _
    // Predicated region
    $region10: #{tpu_custom_call.1} parent=1 // pred_check
      _
    $region11: #{tpu_custom_call.1} parent=1 // pred_check_branch
      %16 = sbr.rel (0) target = $region13
    $region12: #{tpu_custom_call.1} parent=1 // pred_region
      _
    $region13: #{tpu_custom_call.1} parent=1 // pred_fallthru
      _
    // Predicated region
    $region14: #{tpu_custom_call.1} parent=1 // pred_check
      _
    $region15: #{tpu_custom_call.1} parent=1 // pred_check_branch
      %18 = sbr.rel (0) target = $region17
    $region16: #{tpu_custom_call.1} parent=1 // pred_region
      _
    $region17: #{tpu_custom_call.1} parent=1 // pred_fallthru
      _
    // Predicated region
    $region18: #{tpu_custom_call.1} parent=1 // pred_check
      _
    $region19: #{tpu_custom_call.1} parent=1 // pred_check_branch
      %20 = sbr.rel (0) target = $region21
    $region20: #{tpu_custom_call.1} parent=1 // pred_region
      _
    $region21: #{tpu_custom_call.1} parent=1 // pred_fallthru
      _
    %p22 = scmp.eq.s32.totalorder 0, 0
    // Predicated region
    $region22: #{tpu_custom_call.1} parent=1 // pred_check
      %p23 = pneg %p22
    $region23: #{tpu_custom_call.1} parent=1 // pred_check_branch
      %25 = sbr.rel (%p23) target = $region25
    $region24: #{tpu_custom_call.1} parent=1 // pred_region
      %v26 = vld [vmem:[%s4] sm:$0xff]
      %28 = vset.pattern.permute.xlu0 0
      %29 = vperm.xlu0 %28, %v26
      %v30 = vpop.permute.xlu0 %29
      %v32 = vadd.f32 %v30, 0.0
      %33 = vst [vmem:[#allocation2] sm:$0xff] %v32
    $region25: #{tpu_custom_call.1} parent=1 // pred_fallthru
      _
    %v34 = vld [vmem:[%s0] sm:$0xf]
    %v35 = vmul.f32 %v34, 2.0
    %v36 = vmul.f32 %v34, 4.0
    %v38 = vrot.slane %v35, 4
    %vm40 = vcmask 1043456
    %v41 = vsel %vm40, %v34, %v38
    %v42 = vand.u32 2147483647, %v41
    %vm43 = vcmp.le.f32.partialorder %v42, 0.7853982
    %vm44 = vcmp.lt.s32.totalorder %v41, 0
    %v45 = vand.u32 %v41, 2139095040
    %v46 = vshrl.u32 %v45, 23
    %v47 = vsub.s32 %v46, 127
    %v48 = vand.u32 2147483647, %v41
    %v49 = vand.u32 %v48, 8388607
    %v50 = vor.u32 %v49, 8388608
    %v51 = vsub.s32 0, %v50
    %v52 = vadd.s32 %v47, 1
    %vm53 = vcmp.gt.s32.totalorder %v52, 0
    %v54 = vsel %vm53, %v52, 0
    %v55 = vshrl.u32 %v54, 5
    %v56 = vand.u32 %v54, 31
    %v57 = vsub.s32 32, %v56
    %v58 = vshrl.u32 683565275, %v57
    %v59 = vshll.u32 683565275, %v56
    %v60 = vshrl.u32 2475754826, %v57
    %v61 = vor.u32 %v59, %v60
    %v62 = vshll.u32 2475754826, %v56
    %v63 = vshrl.u32 2131351028, %v57
    %v64 = vor.u32 %v62, %v63
    %v65 = vshll.u32 2131351028, %v56
    %v66 = vshrl.u32 2102212464, %v57
    %v67 = vor.u32 %v65, %v66
    %v68 = vshll.u32 2102212464, %v56
    %v69 = vshrl.u32 920167782, %v57
    %v70 = vor.u32 %v68, %v69
    %v71 = vshll.u32 920167782, %v56
    %v72 = vshrl.u32 1326507024, %v57
    %v73 = vor.u32 %v71, %v72
    %vm74 = vcmp.lt.s32.totalorder %v55, 1
    %vm75 = vcmp.lt.s32.totalorder %v55, 2
    %vm76 = vcmp.lt.s32.totalorder %v55, 3
    %vm77 = vcmp.lt.s32.totalorder %v55, 4
    %v78 = vsel %vm74, %v58, %v61
    %v79 = vsel %vm77, %v67, 2102212464
    %v80 = vsel %vm76, %v64, %v79
    %v81 = vsel %vm75, %v78, %v80
    %v82 = vsel %vm74, %v61, %v64
    %v83 = vsel %vm77, %v70, 920167782
    %v84 = vsel %vm76, %v67, %v83
    %v85 = vsel %vm75, %v82, %v84
    %v86 = vsel %vm74, %v64, %v67
    %v87 = vsel %vm77, %v73, 1326507024
    %v88 = vsel %vm76, %v70, %v87
    %v89 = vsel %vm75, %v86, %v88
    %v90 = vshll.u32 %v50, 8
    %v91 = vmul.u32.u64.compose %v90, %v89
    %v92 = vextract.low.u32 %v91
    %v93 = vextract.high.u32 %v91
    %v94 = vmul.u32.u64.compose %v90, %v85
    %v95 = vextract.low.u32 %v94
    %v96 = vextract.high.u32 %v94
    %v97 = vmul.u32 %v90, %v81
    %v98 = vadd.s32 %v93, %v95
    %vm99 = vc.u32 %v93, %v95
    %v100 = vadd.s32 %v96, 1
    %v101 = vsel %vm99, %v100, %v96
    %v102 = vadd.s32 %v97, %v101
    %v103 = vadd.s32 %v102, 536870912
    %v104 = vshrl.u32 %v103, 30
    %v105 = vshll.u32 %v104, 30
    %v106 = vsub.s32 %v102, %v105
    %vm107 = vcmp.lt.s32.totalorder %v106, 0
    %v108 = vsub.s32 0, %v106
    %v109 = vsel %vm107, %v108, %v106
    %v110 = vclz %v109
    %v111 = vsub.s32 %v110, 2
    %vm112 = vcmp.gt.s32.totalorder 0, %v111
    %v113 = vsel %vm112, 0, %v111
    %v114 = vsub.s32 32, %v113
    %v115 = vshll.u32 %v106, %v113
    %v116 = vshrl.u32 %v98, %v114
    %v117 = vor.u32 %v115, %v116
    %v118 = vsub.s32 4294967266, %v113
    %v119 = vadd.s32 %v118, 127
    %v120 = vshll.u32 %v119, 23
    %v121 = vor.u32 4788187, %v120
    %v122 = vand.u32 2147483647, %v121
    %v124 = vcvt.s32.f32 %v117
    %v125 = vmul.f32 %v124, %v122
    %v126 = vxor.u32 %v125, 2147483648
    %v127 = vsel %vm44, %v126, %v125
    %v128 = vsub.s32 4, %v104
    %v129 = vsel %vm44, %v128, %v104
    %v130 = vsel %vm43, %v41, %v127
    %v131 = vsel %vm43, 0, %v129
    %v132 = vcosq.f32.pop %v130
    %v133 = vsinq.f32.pop %v130
    %vm134 = vweird.f32 %v41
    %v135 = vadd.s32 %v131, 3
    %v136 = vand.u32 %v135, 3
    %vm137 = vcmp.lt.s32.totalorder %v136, 2
    %vm138 = vcmp.eq.s32.totalorder %v136, 0
    %v139 = vxor.u32 %v133, 2147483648
    %v140 = vsel %vm138, %v132, %v139
    %vm141 = vcmp.eq.s32.totalorder %v136, 2
    %v142 = vxor.u32 %v132, 2147483648
    %v143 = vsel %vm141, %v142, %v133
    %v144 = vsel %vm137, %v140, %v143
    %v145 = vsel %vm134, nan, %v144
    %v146 = vand.u32 2147483647, %v36
    %vm147 = vcmp.le.f32.partialorder %v146, 0.7853982
    %vm148 = vcmp.lt.s32.totalorder %v36, 0
    %v149 = vand.u32 %v36, 2139095040
    %v150 = vshrl.u32 %v149, 23
    %v151 = vsub.s32 %v150, 127
    %v152 = vand.u32 2147483647, %v36
    %v153 = vand.u32 %v152, 8388607
    %v154 = vor.u32 %v153, 8388608
    %v155 = vsub.s32 0, %v154
    %v156 = vadd.s32 %v151, 1
    %vm157 = vcmp.gt.s32.totalorder %v156, 0
    %v158 = vsel %vm157, %v156, 0
    %v159 = vshrl.u32 %v158, 5
    %v160 = vand.u32 %v158, 31
    %v161 = vsub.s32 32, %v160
    %v162 = vshrl.u32 683565275, %v161
    %v163 = vshll.u32 683565275, %v160
    %v164 = vshrl.u32 2475754826, %v161
    %v165 = vor.u32 %v163, %v164
    %v166 = vshll.u32 2475754826, %v160
    %v167 = vshrl.u32 2131351028, %v161
    %v168 = vor.u32 %v166, %v167
    %v169 = vshll.u32 2131351028, %v160
    %v170 = vshrl.u32 2102212464, %v161
    %v171 = vor.u32 %v169, %v170
    %v172 = vshll.u32 2102212464, %v160
    %v173 = vshrl.u32 920167782, %v161
    %v174 = vor.u32 %v172, %v173
    %v175 = vshll.u32 920167782, %v160
    %v176 = vshrl.u32 1326507024, %v161
    %v177 = vor.u32 %v175, %v176
    %vm178 = vcmp.lt.s32.totalorder %v159, 1
    %vm179 = vcmp.lt.s32.totalorder %v159, 2
    %vm180 = vcmp.lt.s32.totalorder %v159, 3
    %vm181 = vcmp.lt.s32.totalorder %v159, 4
    %v182 = vsel %vm178, %v162, %v165
    %v183 = vsel %vm181, %v171, 2102212464
    %v184 = vsel %vm180, %v168, %v183
    %v185 = vsel %vm179, %v182, %v184
    %v186 = vsel %vm178, %v165, %v168
    %v187 = vsel %vm181, %v174, 920167782
    %v188 = vsel %vm180, %v171, %v187
    %v189 = vsel %vm179, %v186, %v188
    %v190 = vsel %vm178, %v168, %v171
    %v191 = vsel %vm181, %v177, 1326507024
    %v192 = vsel %vm180, %v174, %v191
    %v193 = vsel %vm179, %v190, %v192
    %v194 = vshll.u32 %v154, 8
    %v195 = vmul.u32.u64.compose %v194, %v193
    %v196 = vextract.low.u32 %v195
    %v197 = vextract.high.u32 %v195
    %v198 = vmul.u32.u64.compose %v194, %v189
    %v199 = vextract.low.u32 %v198
    %v200 = vextract.high.u32 %v198
    %v201 = vmul.u32 %v194, %v185
    %v202 = vadd.s32 %v197, %v199
    %vm203 = vc.u32 %v197, %v199
    %v204 = vadd.s32 %v200, 1
    %v205 = vsel %vm203, %v204, %v200
    %v206 = vadd.s32 %v201, %v205
    %v207 = vadd.s32 %v206, 536870912
    %v208 = vshrl.u32 %v207, 30
    %v209 = vshll.u32 %v208, 30
    %v210 = vsub.s32 %v206, %v209
    %vm211 = vcmp.lt.s32.totalorder %v210, 0
    %v212 = vsub.s32 0, %v210
    %v213 = vsel %vm211, %v212, %v210
    %v214 = vclz %v213
    %v215 = vsub.s32 %v214, 2
    %vm216 = vcmp.gt.s32.totalorder 0, %v215
    %v217 = vsel %vm216, 0, %v215
    %v218 = vsub.s32 32, %v217
    %v219 = vshll.u32 %v210, %v217
    %v220 = vshrl.u32 %v202, %v218
    %v221 = vor.u32 %v219, %v220
    %v222 = vsub.s32 4294967266, %v217
    %v223 = vadd.s32 %v222, 127
    %v224 = vshll.u32 %v223, 23
    %v225 = vor.u32 4788187, %v224
    %v226 = vand.u32 2147483647, %v225
    %v228 = vcvt.s32.f32 %v221
    %v229 = vmul.f32 %v228, %v226
    %v230 = vxor.u32 %v229, 2147483648
    %v231 = vsel %vm148, %v230, %v229
    %v232 = vsub.s32 4, %v208
    %v233 = vsel %vm148, %v232, %v208
    %v234 = vsel %vm147, %v36, %v231
    %v235 = vsel %vm147, 0, %v233
    %v236 = vcosq.f32.pop %v234
    %v237 = vsinq.f32.pop %v234
    %vm238 = vweird.f32 %v36
    %v239 = vadd.s32 %v235, 3
    %v240 = vand.u32 %v239, 3
    %vm241 = vcmp.lt.s32.totalorder %v240, 2
    %vm242 = vcmp.eq.s32.totalorder %v240, 0
    %v243 = vxor.u32 %v237, 2147483648
    %v244 = vsel %vm242, %v236, %v243
    %vm245 = vcmp.eq.s32.totalorder %v240, 2
    %v246 = vxor.u32 %v236, 2147483648
    %v247 = vsel %vm245, %v246, %v237
    %v248 = vsel %vm241, %v244, %v247
    %v249 = vsel %vm238, nan, %v248
    %v250 = vand.u32 2147483647, %v41
    %vm251 = vcmp.le.f32.partialorder %v250, 0.7853982
    %vm252 = vcmp.lt.s32.totalorder %v41, 0
    %v253 = vand.u32 %v41, 2139095040
    %v254 = vshrl.u32 %v253, 23
    %v255 = vsub.s32 %v254, 127
    %v256 = vand.u32 2147483647, %v41
    %v257 = vand.u32 %v256, 8388607
    %v258 = vor.u32 %v257, 8388608
    %v259 = vsub.s32 0, %v258
    %v260 = vadd.s32 %v255, 1
    %vm261 = vcmp.gt.s32.totalorder %v260, 0
    %v262 = vsel %vm261, %v260, 0
    %v263 = vshrl.u32 %v262, 5
    %v264 = vand.u32 %v262, 31
    %v265 = vsub.s32 32, %v264
    %v266 = vshrl.u32 683565275, %v265
    %v267 = vshll.u32 683565275, %v264
    %v268 = vshrl.u32 2475754826, %v265
    %v269 = vor.u32 %v267, %v268
    %v270 = vshll.u32 2475754826, %v264
    %v271 = vshrl.u32 2131351028, %v265
    %v272 = vor.u32 %v270, %v271
    %v273 = vshll.u32 2131351028, %v264
    %v274 = vshrl.u32 2102212464, %v265
    %v275 = vor.u32 %v273, %v274
    %v276 = vshll.u32 2102212464, %v264
    %v277 = vshrl.u32 920167782, %v265
    %v278 = vor.u32 %v276, %v277
    %v279 = vshll.u32 920167782, %v264
    %v280 = vshrl.u32 1326507024, %v265
    %v281 = vor.u32 %v279, %v280
    %vm282 = vcmp.lt.s32.totalorder %v263, 1
    %vm283 = vcmp.lt.s32.totalorder %v263, 2
    %vm284 = vcmp.lt.s32.totalorder %v263, 3
    %vm285 = vcmp.lt.s32.totalorder %v263, 4
    %v286 = vsel %vm282, %v266, %v269
    %v287 = vsel %vm285, %v275, 2102212464
    %v288 = vsel %vm284, %v272, %v287
    %v289 = vsel %vm283, %v286, %v288
    %v290 = vsel %vm282, %v269, %v272
    %v291 = vsel %vm285, %v278, 920167782
    %v292 = vsel %vm284, %v275, %v291
    %v293 = vsel %vm283, %v290, %v292
    %v294 = vsel %vm282, %v272, %v275
    %v295 = vsel %vm285, %v281, 1326507024
    %v296 = vsel %vm284, %v278, %v295
    %v297 = vsel %vm283, %v294, %v296
    %v298 = vshll.u32 %v258, 8
    %v299 = vmul.u32.u64.compose %v298, %v297
    %v300 = vextract.low.u32 %v299
    %v301 = vextract.high.u32 %v299
    %v302 = vmul.u32.u64.compose %v298, %v293
    %v303 = vextract.low.u32 %v302
    %v304 = vextract.high.u32 %v302
    %v305 = vmul.u32 %v298, %v289
    %v306 = vadd.s32 %v301, %v303
    %vm307 = vc.u32 %v301, %v303
    %v308 = vadd.s32 %v304, 1
    %v309 = vsel %vm307, %v308, %v304
    %v310 = vadd.s32 %v305, %v309
    %v311 = vadd.s32 %v310, 536870912
    %v312 = vshrl.u32 %v311, 30
    %v313 = vshll.u32 %v312, 30
    %v314 = vsub.s32 %v310, %v313
    %vm315 = vcmp.lt.s32.totalorder %v314, 0
    %v316 = vsub.s32 0, %v314
    %v317 = vsel %vm315, %v316, %v314
    %v318 = vclz %v317
    %v319 = vsub.s32 %v318, 2
    %vm320 = vcmp.gt.s32.totalorder 0, %v319
    %v321 = vsel %vm320, 0, %v319
    %v322 = vsub.s32 32, %v321
    %v323 = vshll.u32 %v314, %v321
    %v324 = vshrl.u32 %v306, %v322
    %v325 = vor.u32 %v323, %v324
    %v326 = vsub.s32 4294967266, %v321
    %v327 = vadd.s32 %v326, 127
    %v328 = vshll.u32 %v327, 23
    %v329 = vor.u32 4788187, %v328
    %v330 = vand.u32 2147483647, %v329
    %v332 = vcvt.s32.f32 %v325
    %v333 = vmul.f32 %v332, %v330
    %v334 = vxor.u32 %v333, 2147483648
    %v335 = vsel %vm252, %v334, %v333
    %v336 = vsub.s32 4, %v312
    %v337 = vsel %vm252, %v336, %v312
    %v338 = vsel %vm251, %v41, %v335
    %v339 = vsel %vm251, 0, %v337
    %v340 = vcosq.f32.pop %v338
    %v341 = vsinq.f32.pop %v338
    %vm342 = vweird.f32 %v41
    %v343 = vand.u32 %v339, 3
    %vm344 = vcmp.lt.s32.totalorder %v343, 2
    %vm345 = vcmp.eq.s32.totalorder %v343, 0
    %v346 = vxor.u32 %v341, 2147483648
    %v347 = vsel %vm345, %v340, %v346
    %vm348 = vcmp.eq.s32.totalorder %v343, 2
    %v349 = vxor.u32 %v340, 2147483648
    %v350 = vsel %vm348, %v349, %v341
    %v351 = vsel %vm344, %v347, %v350
    %v352 = vsel %vm342, nan, %v351
    %v353 = vand.u32 2147483647, %v36
    %vm354 = vcmp.le.f32.partialorder %v353, 0.7853982
    %vm355 = vcmp.lt.s32.totalorder %v36, 0
    %v356 = vand.u32 %v36, 2139095040
    %v357 = vshrl.u32 %v356, 23
    %v358 = vsub.s32 %v357, 127
    %v359 = vand.u32 2147483647, %v36
    %v360 = vand.u32 %v359, 8388607
    %v361 = vor.u32 %v360, 8388608
    %v362 = vsub.s32 0, %v361
    %v363 = vadd.s32 %v358, 1
    %vm364 = vcmp.gt.s32.totalorder %v363, 0
    %v365 = vsel %vm364, %v363, 0
    %v366 = vshrl.u32 %v365, 5
    %v367 = vand.u32 %v365, 31
    %v368 = vsub.s32 32, %v367
    %v369 = vshrl.u32 683565275, %v368
    %v370 = vshll.u32 683565275, %v367
    %v371 = vshrl.u32 2475754826, %v368
    %v372 = vor.u32 %v370, %v371
    %v373 = vshll.u32 2475754826, %v367
    %v374 = vshrl.u32 2131351028, %v368
    %v375 = vor.u32 %v373, %v374
    %v376 = vshll.u32 2131351028, %v367
    %v377 = vshrl.u32 2102212464, %v368
    %v378 = vor.u32 %v376, %v377
    %v379 = vshll.u32 2102212464, %v367
    %v380 = vshrl.u32 920167782, %v368
    %v381 = vor.u32 %v379, %v380
    %v382 = vshll.u32 920167782, %v367
    %v383 = vshrl.u32 1326507024, %v368
    %v384 = vor.u32 %v382, %v383
    %vm385 = vcmp.lt.s32.totalorder %v366, 1
    %vm386 = vcmp.lt.s32.totalorder %v366, 2
    %vm387 = vcmp.lt.s32.totalorder %v366, 3
    %vm388 = vcmp.lt.s32.totalorder %v366, 4
    %v389 = vsel %vm385, %v369, %v372
    %v390 = vsel %vm388, %v378, 2102212464
    %v391 = vsel %vm387, %v375, %v390
    %v392 = vsel %vm386, %v389, %v391
    %v393 = vsel %vm385, %v372, %v375
    %v394 = vsel %vm388, %v381, 920167782
    %v395 = vsel %vm387, %v378, %v394
    %v396 = vsel %vm386, %v393, %v395
    %v397 = vsel %vm385, %v375, %v378
    %v398 = vsel %vm388, %v384, 1326507024
    %v399 = vsel %vm387, %v381, %v398
    %v400 = vsel %vm386, %v397, %v399
    %v401 = vshll.u32 %v361, 8
    %v402 = vmul.u32.u64.compose %v401, %v400
    %v403 = vextract.low.u32 %v402
    %v404 = vextract.high.u32 %v402
    %v405 = vmul.u32.u64.compose %v401, %v396
    %v406 = vextract.low.u32 %v405
    %v407 = vextract.high.u32 %v405
    %v408 = vmul.u32 %v401, %v392
    %v409 = vadd.s32 %v404, %v406
    %vm410 = vc.u32 %v404, %v406
    %v411 = vadd.s32 %v407, 1
    %v412 = vsel %vm410, %v411, %v407
    %v413 = vadd.s32 %v408, %v412
    %v414 = vadd.s32 %v413, 536870912
    %v415 = vshrl.u32 %v414, 30
    %v416 = vshll.u32 %v415, 30
    %v417 = vsub.s32 %v413, %v416
    %vm418 = vcmp.lt.s32.totalorder %v417, 0
    %v419 = vsub.s32 0, %v417
    %v420 = vsel %vm418, %v419, %v417
    %v421 = vclz %v420
    %v422 = vsub.s32 %v421, 2
    %vm423 = vcmp.gt.s32.totalorder 0, %v422
    %v424 = vsel %vm423, 0, %v422
    %v425 = vsub.s32 32, %v424
    %v426 = vshll.u32 %v417, %v424
    %v427 = vshrl.u32 %v409, %v425
    %v428 = vor.u32 %v426, %v427
    %v429 = vsub.s32 4294967266, %v424
    %v430 = vadd.s32 %v429, 127
    %v431 = vshll.u32 %v430, 23
    %v432 = vor.u32 4788187, %v431
    %v433 = vand.u32 2147483647, %v432
    %v435 = vcvt.s32.f32 %v428
    %v436 = vmul.f32 %v435, %v433
    %v437 = vxor.u32 %v436, 2147483648
    %v438 = vsel %vm355, %v437, %v436
    %v439 = vsub.s32 4, %v415
    %v440 = vsel %vm355, %v439, %v415
    %v441 = vsel %vm354, %v36, %v438
    %v442 = vsel %vm354, 0, %v440
    %v443 = vcosq.f32.pop %v441
    %v444 = vsinq.f32.pop %v441
    %vm445 = vweird.f32 %v36
    %v446 = vand.u32 %v442, 3
    %vm447 = vcmp.lt.s32.totalorder %v446, 2
    %vm448 = vcmp.eq.s32.totalorder %v446, 0
    %v449 = vxor.u32 %v444, 2147483648
    %v450 = vsel %vm448, %v443, %v449
    %vm451 = vcmp.eq.s32.totalorder %v446, 2
    %v452 = vxor.u32 %v443, 2147483648
    %v453 = vsel %vm451, %v452, %v444
    %v454 = vsel %vm447, %v450, %v453
    %v455 = vsel %vm445, nan, %v454
    %v458 = vrot.slane %v145, 4
    %v459 = vrot.slane %v249, 4
    %v460 = vsel %vm40, %v458, %v459
    %v463 = vsel %vm40, %v34, %v458
    %v464 = vpack.c.bf16 %v460, %v463
    %v465 = vpack.c.bf16 %v455, %v352
    %v466 = vld [vmem:[%s1] sm:$0xf]
    %v467 = vld [vmem:[%s1 + $0x4] sm:$0xf]
    %v468 = vld [vmem:[%s1 + $0x8] sm:$0xf]
    %v469 = vld [vmem:[%s1 + $0xc] sm:$0xf]
    %v470 = vld [vmem:[%s1 + $0x10] sm:$0xf]
    %v471 = vld [vmem:[%s1 + $0x14] sm:$0xf]
    %v472 = vld [vmem:[%s1 + $0x18] sm:$0xf]
    %v473 = vld [vmem:[%s1 + $0x1c] sm:$0xf]
    %v474 = vld [vmem:[%s1 + $0x20] sm:$0xf]
    %v475 = vld [vmem:[%s1 + $0x24] sm:$0xf]
    %v476 = vld [vmem:[%s1 + $0x28] sm:$0xf]
    %v477 = vld [vmem:[%s1 + $0x2c] sm:$0xf]
    %v478 = vld [vmem:[%s1 + $0x30] sm:$0xf]
    %v479 = vld [vmem:[%s1 + $0x34] sm:$0xf]
    %v480 = vld [vmem:[%s1 + $0x38] sm:$0xf]
    %v481 = vld [vmem:[%s1 + $0x3c] sm:$0xf]
    %v482 = vld [vmem:[%s1 + $0x40] sm:$0xf]
    %v483 = vld [vmem:[%s1 + $0x44] sm:$0xf]
    %v484 = vld [vmem:[%s1 + $0x48] sm:$0xf]
    %v485 = vld [vmem:[%s1 + $0x4c] sm:$0xf]
    %v486 = vld [vmem:[%s1 + $0x50] sm:$0xf]
    %v487 = vld [vmem:[%s1 + $0x54] sm:$0xf]
    %v488 = vld [vmem:[%s1 + $0x58] sm:$0xf]
    %v489 = vld [vmem:[%s1 + $0x5c] sm:$0xf]
    %v490 = vld [vmem:[%s1 + $0x60] sm:$0xf]
    %v491 = vld [vmem:[%s1 + $0x64] sm:$0xf]
    %v492 = vld [vmem:[%s1 + $0x68] sm:$0xf]
    %v493 = vld [vmem:[%s1 + $0x6c] sm:$0xf]
    %v494 = vld [vmem:[%s1 + $0x70] sm:$0xf]
    %v495 = vld [vmem:[%s1 + $0x74] sm:$0xf]
    %v496 = vld [vmem:[%s1 + $0x78] sm:$0xf]
    %v497 = vld [vmem:[%s1 + $0x7c] sm:$0xf]
    %v498 = vld [vmem:[%s1 + $0x80] sm:$0xf]
    %v499 = vld [vmem:[%s1 + $0x84] sm:$0xf]
    %v500 = vld [vmem:[%s1 + $0x88] sm:$0xf]
    %v501 = vld [vmem:[%s1 + $0x8c] sm:$0xf]
    %v502 = vld [vmem:[%s1 + $0x90] sm:$0xf]
    %v503 = vld [vmem:[%s1 + $0x94] sm:$0xf]
    %v504 = vld [vmem:[%s1 + $0x98] sm:$0xf]
    %v505 = vld [vmem:[%s1 + $0x9c] sm:$0xf]
    %v506 = vld [vmem:[%s1 + $0xa0] sm:$0xf]
    %v507 = vld [vmem:[%s1 + $0xa4] sm:$0xf]
    %v508 = vld [vmem:[%s1 + $0xa8] sm:$0xf]
    %v509 = vld [vmem:[%s1 + $0xac] sm:$0xf]
    %v510 = vld [vmem:[%s1 + $0xb0] sm:$0xf]
    %v511 = vld [vmem:[%s1 + $0xb4] sm:$0xf]
    %v512 = vld [vmem:[%s1 + $0xb8] sm:$0xf]
    %v513 = vld [vmem:[%s1 + $0xbc] sm:$0xf]
    %v514 = vld [vmem:[%s1 + $0xc0] sm:$0xf]
    %v515 = vld [vmem:[%s1 + $0xc4] sm:$0xf]
    %v516 = vld [vmem:[%s1 + $0xc8] sm:$0xf]
    %v517 = vld [vmem:[%s1 + $0xcc] sm:$0xf]
    %v518 = vld [vmem:[%s1 + $0xd0] sm:$0xf]
    %v519 = vld [vmem:[%s1 + $0xd4] sm:$0xf]
    %v520 = vld [vmem:[%s1 + $0xd8] sm:$0xf]
    %v521 = vld [vmem:[%s1 + $0xdc] sm:$0xf]
    %v522 = vld [vmem:[%s1 + $0xe0] sm:$0xf]
    %v523 = vld [vmem:[%s1 + $0xe4] sm:$0xf]
    %v524 = vld [vmem:[%s1 + $0xe8] sm:$0xf]
    %v525 = vld [vmem:[%s1 + $0xec] sm:$0xf]
    %v526 = vld [vmem:[%s1 + $0xf0] sm:$0xf]
    %v527 = vld [vmem:[%s1 + $0xf4] sm:$0xf]
    %v528 = vld [vmem:[%s1 + $0xf8] sm:$0xf]
    %v529 = vld [vmem:[%s1 + $0xfc] sm:$0xf]
    %v530 = vld [vmem:[%s1 + $0x100] sm:$0xf]
    %v531 = vld [vmem:[%s1 + $0x104] sm:$0xf]
    %v532 = vld [vmem:[%s1 + $0x108] sm:$0xf]
    %v533 = vld [vmem:[%s1 + $0x10c] sm:$0xf]
    %v534 = vld [vmem:[%s1 + $0x110] sm:$0xf]
    %v535 = vld [vmem:[%s1 + $0x114] sm:$0xf]
    %v536 = vld [vmem:[%s1 + $0x118] sm:$0xf]
    %v537 = vld [vmem:[%s1 + $0x11c] sm:$0xf]
    %v538 = vld [vmem:[%s1 + $0x120] sm:$0xf]
    %v539 = vld [vmem:[%s1 + $0x124] sm:$0xf]
    %v540 = vld [vmem:[%s1 + $0x128] sm:$0xf]
    %v541 = vld [vmem:[%s1 + $0x12c] sm:$0xf]
    %v542 = vld [vmem:[%s1 + $0x130] sm:$0xf]
    %v543 = vld [vmem:[%s1 + $0x134] sm:$0xf]
    %v544 = vld [vmem:[%s1 + $0x138] sm:$0xf]
    %v545 = vld [vmem:[%s1 + $0x13c] sm:$0xf]
    %v546 = vld [vmem:[%s1 + $0x140] sm:$0xf]
    %v547 = vld [vmem:[%s1 + $0x144] sm:$0xf]
    %v548 = vld [vmem:[%s1 + $0x148] sm:$0xf]
    %v549 = vld [vmem:[%s1 + $0x14c] sm:$0xf]
    %v550 = vld [vmem:[%s1 + $0x150] sm:$0xf]
    %v551 = vld [vmem:[%s1 + $0x154] sm:$0xf]
    %v552 = vld [vmem:[%s1 + $0x158] sm:$0xf]
    %v553 = vld [vmem:[%s1 + $0x15c] sm:$0xf]
    %v554 = vld [vmem:[%s1 + $0x160] sm:$0xf]
    %v555 = vld [vmem:[%s1 + $0x164] sm:$0xf]
    %v556 = vld [vmem:[%s1 + $0x168] sm:$0xf]
    %v557 = vld [vmem:[%s1 + $0x16c] sm:$0xf]
    %v558 = vld [vmem:[%s1 + $0x170] sm:$0xf]
    %v559 = vld [vmem:[%s1 + $0x174] sm:$0xf]
    %v560 = vld [vmem:[%s1 + $0x178] sm:$0xf]
    %v561 = vld [vmem:[%s1 + $0x17c] sm:$0xf]
    %v562 = vld [vmem:[%s1 + $0x180] sm:$0xf]
    %v563 = vld [vmem:[%s1 + $0x184] sm:$0xf]
    %v564 = vld [vmem:[%s1 + $0x188] sm:$0xf]
    %v565 = vld [vmem:[%s1 + $0x18c] sm:$0xf]
    %v566 = vld [vmem:[%s1 + $0x190] sm:$0xf]
    %v567 = vld [vmem:[%s1 + $0x194] sm:$0xf]
    %v568 = vld [vmem:[%s1 + $0x198] sm:$0xf]
    %v569 = vld [vmem:[%s1 + $0x19c] sm:$0xf]
    %v570 = vld [vmem:[%s1 + $0x1a0] sm:$0xf]
    %v571 = vld [vmem:[%s1 + $0x1a4] sm:$0xf]
    %v572 = vld [vmem:[%s1 + $0x1a8] sm:$0xf]
    %v573 = vld [vmem:[%s1 + $0x1ac] sm:$0xf]
    %v574 = vld [vmem:[%s1 + $0x1b0] sm:$0xf]
    %v575 = vld [vmem:[%s1 + $0x1b4] sm:$0xf]
    %v576 = vld [vmem:[%s1 + $0x1b8] sm:$0xf]
    %v577 = vld [vmem:[%s1 + $0x1bc] sm:$0xf]
    %v578 = vld [vmem:[%s1 + $0x1c0] sm:$0xf]
    %v579 = vld [vmem:[%s1 + $0x1c4] sm:$0xf]
    %v580 = vld [vmem:[%s1 + $0x1c8] sm:$0xf]
    %v581 = vld [vmem:[%s1 + $0x1cc] sm:$0xf]
    %v582 = vld [vmem:[%s1 + $0x1d0] sm:$0xf]
    %v583 = vld [vmem:[%s1 + $0x1d4] sm:$0xf]
    %v584 = vld [vmem:[%s1 + $0x1d8] sm:$0xf]
    %v585 = vld [vmem:[%s1 + $0x1dc] sm:$0xf]
    %v586 = vld [vmem:[%s1 + $0x1e0] sm:$0xf]
    %v587 = vld [vmem:[%s1 + $0x1e4] sm:$0xf]
    %v588 = vld [vmem:[%s1 + $0x1e8] sm:$0xf]
    %v589 = vld [vmem:[%s1 + $0x1ec] sm:$0xf]
    %v590 = vld [vmem:[%s1 + $0x1f0] sm:$0xf]
    %v591 = vld [vmem:[%s1 + $0x1f4] sm:$0xf]
    %v592 = vld [vmem:[%s1 + $0x1f8] sm:$0xf]
    %v593 = vld [vmem:[%s1 + $0x1fc] sm:$0xf]
    %v594 = vld [vmem:[%s2] sm:$0xff]
    %v595 = vld [vmem:[%s2 + $0x8] sm:$0xff]
    %v596 = vld [vmem:[%s2 + $0x10] sm:$0xff]
    %v597 = vld [vmem:[%s2 + $0x18] sm:$0xff]
    %v598 = vld [vmem:[%s2 + $0x20] sm:$0xff]
    %v599 = vld [vmem:[%s2 + $0x28] sm:$0xff]
    %v600 = vld [vmem:[%s2 + $0x30] sm:$0xff]
    %v601 = vld [vmem:[%s2 + $0x38] sm:$0xff]
    %v602 = vld [vmem:[%s2 + $0x40] sm:$0xff]
    %v603 = vld [vmem:[%s2 + $0x48] sm:$0xff]
    %v604 = vld [vmem:[%s2 + $0x50] sm:$0xff]
    %v605 = vld [vmem:[%s2 + $0x58] sm:$0xff]
    %v606 = vld [vmem:[%s2 + $0x60] sm:$0xff]
    %v607 = vld [vmem:[%s2 + $0x68] sm:$0xff]
    %v608 = vld [vmem:[%s2 + $0x70] sm:$0xff]
    %v609 = vld [vmem:[%s2 + $0x78] sm:$0xff]
    %v610 = vld [vmem:[%s2 + $0x80] sm:$0xff]
    %v611 = vld [vmem:[%s2 + $0x88] sm:$0xff]
    %v612 = vld [vmem:[%s2 + $0x90] sm:$0xff]
    %v613 = vld [vmem:[%s2 + $0x98] sm:$0xff]
    %v614 = vld [vmem:[%s2 + $0xa0] sm:$0xff]
    %v615 = vld [vmem:[%s2 + $0xa8] sm:$0xff]
    %v616 = vld [vmem:[%s2 + $0xb0] sm:$0xff]
    %v617 = vld [vmem:[%s2 + $0xb8] sm:$0xff]
    %v618 = vld [vmem:[%s2 + $0xc0] sm:$0xff]
    %v619 = vld [vmem:[%s2 + $0xc8] sm:$0xff]
    %v620 = vld [vmem:[%s2 + $0xd0] sm:$0xff]
    %v621 = vld [vmem:[%s2 + $0xd8] sm:$0xff]
    %v622 = vld [vmem:[%s2 + $0xe0] sm:$0xff]
    %v623 = vld [vmem:[%s2 + $0xe8] sm:$0xff]
    %v624 = vld [vmem:[%s2 + $0xf0] sm:$0xff]
    %v625 = vld [vmem:[%s2 + $0xf8] sm:$0xff]
    %v626 = vld [vmem:[%s2 + $0x100] sm:$0xff]
    %v627 = vld [vmem:[%s2 + $0x108] sm:$0xff]
    %v628 = vld [vmem:[%s2 + $0x110] sm:$0xff]
    %v629 = vld [vmem:[%s2 + $0x118] sm:$0xff]
    %v630 = vld [vmem:[%s2 + $0x120] sm:$0xff]
    %v631 = vld [vmem:[%s2 + $0x128] sm:$0xff]
    %v632 = vld [vmem:[%s2 + $0x130] sm:$0xff]
    %v633 = vld [vmem:[%s2 + $0x138] sm:$0xff]
    %v634 = vld [vmem:[%s2 + $0x140] sm:$0xff]
    %v635 = vld [vmem:[%s2 + $0x148] sm:$0xff]
    %v636 = vld [vmem:[%s2 + $0x150] sm:$0xff]
    %v637 = vld [vmem:[%s2 + $0x158] sm:$0xff]
    %v638 = vld [vmem:[%s2 + $0x160] sm:$0xff]
    %v639 = vld [vmem:[%s2 + $0x168] sm:$0xff]
    %v640 = vld [vmem:[%s2 + $0x170] sm:$0xff]
    %v641 = vld [vmem:[%s2 + $0x178] sm:$0xff]
    %v642 = vld [vmem:[%s2 + $0x180] sm:$0xff]
    %v643 = vld [vmem:[%s2 + $0x188] sm:$0xff]
    %v644 = vld [vmem:[%s2 + $0x190] sm:$0xff]
    %v645 = vld [vmem:[%s2 + $0x198] sm:$0xff]
    %v646 = vld [vmem:[%s2 + $0x1a0] sm:$0xff]
    %v647 = vld [vmem:[%s2 + $0x1a8] sm:$0xff]
    %v648 = vld [vmem:[%s2 + $0x1b0] sm:$0xff]
    %v649 = vld [vmem:[%s2 + $0x1b8] sm:$0xff]
    %v650 = vld [vmem:[%s2 + $0x1c0] sm:$0xff]
    %v651 = vld [vmem:[%s2 + $0x1c8] sm:$0xff]
    %v652 = vld [vmem:[%s2 + $0x1d0] sm:$0xff]
    %v653 = vld [vmem:[%s2 + $0x1d8] sm:$0xff]
    %v654 = vld [vmem:[%s2 + $0x1e0] sm:$0xff]
    %v655 = vld [vmem:[%s2 + $0x1e8] sm:$0xff]
    %v656 = vld [vmem:[%s2 + $0x1f0] sm:$0xff]
    %v657 = vld [vmem:[%s2 + $0x1f8] sm:$0xff]
    %v658 = vld [vmem:[%s2 + $0x200] sm:$0xff]
    %v659 = vld [vmem:[%s2 + $0x208] sm:$0xff]
    %v660 = vld [vmem:[%s2 + $0x210] sm:$0xff]
    %v661 = vld [vmem:[%s2 + $0x218] sm:$0xff]
    %v662 = vld [vmem:[%s2 + $0x220] sm:$0xff]
    %v663 = vld [vmem:[%s2 + $0x228] sm:$0xff]
    %v664 = vld [vmem:[%s2 + $0x230] sm:$0xff]
    %v665 = vld [vmem:[%s2 + $0x238] sm:$0xff]
    %v666 = vld [vmem:[%s2 + $0x240] sm:$0xff]
    %v667 = vld [vmem:[%s2 + $0x248] sm:$0xff]
    %v668 = vld [vmem:[%s2 + $0x250] sm:$0xff]
    %v669 = vld [vmem:[%s2 + $0x258] sm:$0xff]
    %v670 = vld [vmem:[%s2 + $0x260] sm:$0xff]
    %v671 = vld [vmem:[%s2 + $0x268] sm:$0xff]
    %v672 = vld [vmem:[%s2 + $0x270] sm:$0xff]
    %v673 = vld [vmem:[%s2 + $0x278] sm:$0xff]
    %v674 = vld [vmem:[%s2 + $0x280] sm:$0xff]
    %v675 = vld [vmem:[%s2 + $0x288] sm:$0xff]
    %v676 = vld [vmem:[%s2 + $0x290] sm:$0xff]
    %v677 = vld [vmem:[%s2 + $0x298] sm:$0xff]
    %v678 = vld [vmem:[%s2 + $0x2a0] sm:$0xff]
    %v679 = vld [vmem:[%s2 + $0x2a8] sm:$0xff]
    %v680 = vld [vmem:[%s2 + $0x2b0] sm:$0xff]
    %v681 = vld [vmem:[%s2 + $0x2b8] sm:$0xff]
    %v682 = vld [vmem:[%s2 + $0x2c0] sm:$0xff]
    %v683 = vld [vmem:[%s2 + $0x2c8] sm:$0xff]
    %v684 = vld [vmem:[%s2 + $0x2d0] sm:$0xff]
    %v685 = vld [vmem:[%s2 + $0x2d8] sm:$0xff]
    %v686 = vld [vmem:[%s2 + $0x2e0] sm:$0xff]
    %v687 = vld [vmem:[%s2 + $0x2e8] sm:$0xff]
    %v688 = vld [vmem:[%s2 + $0x2f0] sm:$0xff]
    %v689 = vld [vmem:[%s2 + $0x2f8] sm:$0xff]
    %v690 = vld [vmem:[%s2 + $0x300] sm:$0xff]
    %v691 = vld [vmem:[%s2 + $0x308] sm:$0xff]
    %v692 = vld [vmem:[%s2 + $0x310] sm:$0xff]
    %v693 = vld [vmem:[%s2 + $0x318] sm:$0xff]
    %v694 = vld [vmem:[%s2 + $0x320] sm:$0xff]
    %v695 = vld [vmem:[%s2 + $0x328] sm:$0xff]
    %v696 = vld [vmem:[%s2 + $0x330] sm:$0xff]
    %v697 = vld [vmem:[%s2 + $0x338] sm:$0xff]
    %v698 = vld [vmem:[%s2 + $0x340] sm:$0xff]
    %v699 = vld [vmem:[%s2 + $0x348] sm:$0xff]
    %v700 = vld [vmem:[%s2 + $0x350] sm:$0xff]
    %v701 = vld [vmem:[%s2 + $0x358] sm:$0xff]
    %v702 = vld [vmem:[%s2 + $0x360] sm:$0xff]
    %v703 = vld [vmem:[%s2 + $0x368] sm:$0xff]
    %v704 = vld [vmem:[%s2 + $0x370] sm:$0xff]
    %v705 = vld [vmem:[%s2 + $0x378] sm:$0xff]
    %v706 = vld [vmem:[%s2 + $0x380] sm:$0xff]
    %v707 = vld [vmem:[%s2 + $0x388] sm:$0xff]
    %v708 = vld [vmem:[%s2 + $0x390] sm:$0xff]
    %v709 = vld [vmem:[%s2 + $0x398] sm:$0xff]
    %v710 = vld [vmem:[%s2 + $0x3a0] sm:$0xff]
    %v711 = vld [vmem:[%s2 + $0x3a8] sm:$0xff]
    %v712 = vld [vmem:[%s2 + $0x3b0] sm:$0xff]
    %v713 = vld [vmem:[%s2 + $0x3b8] sm:$0xff]
    %v714 = vld [vmem:[%s2 + $0x3c0] sm:$0xff]
    %v715 = vld [vmem:[%s2 + $0x3c8] sm:$0xff]
    %v716 = vld [vmem:[%s2 + $0x3d0] sm:$0xff]
    %v717 = vld [vmem:[%s2 + $0x3d8] sm:$0xff]
    %v718 = vld [vmem:[%s2 + $0x3e0] sm:$0xff]
    %v719 = vld [vmem:[%s2 + $0x3e8] sm:$0xff]
    %v720 = vld [vmem:[%s2 + $0x3f0] sm:$0xff]
    %v721 = vld [vmem:[%s2 + $0x3f8] sm:$0xff]
    %723 = vset.pattern.permute.xlu0 0
    %724 = vperm.xlu0 %723, %v594
    %v725 = vpop.permute.xlu0 %724
    %728 = vset.pattern.permute.xlu0 0
    %729 = vperm.xlu0 %728, %v595
    %v730 = vpop.permute.xlu0 %729
    %733 = vset.pattern.permute.xlu0 0
    %734 = vperm.xlu0 %733, %v596
    %v735 = vpop.permute.xlu0 %734
    %738 = vset.pattern.permute.xlu0 0
    %739 = vperm.xlu0 %738, %v597
    %v740 = vpop.permute.xlu0 %739
    %743 = vset.pattern.permute.xlu0 0
    %744 = vperm.xlu0 %743, %v598
    %v745 = vpop.permute.xlu0 %744
    %748 = vset.pattern.permute.xlu0 0
    %749 = vperm.xlu0 %748, %v599
    %v750 = vpop.permute.xlu0 %749
    %753 = vset.pattern.permute.xlu0 0
    %754 = vperm.xlu0 %753, %v600
    %v755 = vpop.permute.xlu0 %754
    %758 = vset.pattern.permute.xlu0 0
    %759 = vperm.xlu0 %758, %v601
    %v760 = vpop.permute.xlu0 %759
    %763 = vset.pattern.permute.xlu0 0
    %764 = vperm.xlu0 %763, %v602
    %v765 = vpop.permute.xlu0 %764
    %768 = vset.pattern.permute.xlu0 0
    %769 = vperm.xlu0 %768, %v603
    %v770 = vpop.permute.xlu0 %769
    %773 = vset.pattern.permute.xlu0 0
    %774 = vperm.xlu0 %773, %v604
    %v775 = vpop.permute.xlu0 %774
    %778 = vset.pattern.permute.xlu0 0
    %779 = vperm.xlu0 %778, %v605
    %v780 = vpop.permute.xlu0 %779
    %783 = vset.pattern.permute.xlu0 0
    %784 = vperm.xlu0 %783, %v606
    %v785 = vpop.permute.xlu0 %784
    %788 = vset.pattern.permute.xlu0 0
    %789 = vperm.xlu0 %788, %v607
    %v790 = vpop.permute.xlu0 %789
    %793 = vset.pattern.permute.xlu0 0
    %794 = vperm.xlu0 %793, %v608
    %v795 = vpop.permute.xlu0 %794
    %798 = vset.pattern.permute.xlu0 0
    %799 = vperm.xlu0 %798, %v609
    %v800 = vpop.permute.xlu0 %799
    %803 = vset.pattern.permute.xlu0 0
    %804 = vperm.xlu0 %803, %v610
    %v805 = vpop.permute.xlu0 %804
    %808 = vset.pattern.permute.xlu0 0
    %809 = vperm.xlu0 %808, %v611
    %v810 = vpop.permute.xlu0 %809
    %813 = vset.pattern.permute.xlu0 0
    %814 = vperm.xlu0 %813, %v612
    %v815 = vpop.permute.xlu0 %814
    %818 = vset.pattern.permute.xlu0 0
    %819 = vperm.xlu0 %818, %v613
    %v820 = vpop.permute.xlu0 %819
    %823 = vset.pattern.permute.xlu0 0
    %824 = vperm.xlu0 %823, %v614
    %v825 = vpop.permute.xlu0 %824
    %828 = vset.pattern.permute.xlu0 0
    %829 = vperm.xlu0 %828, %v615
    %v830 = vpop.permute.xlu0 %829
    %833 = vset.pattern.permute.xlu0 0
    %834 = vperm.xlu0 %833, %v616
    %v835 = vpop.permute.xlu0 %834
    %838 = vset.pattern.permute.xlu0 0
    %839 = vperm.xlu0 %838, %v617
    %v840 = vpop.permute.xlu0 %839
    %843 = vset.pattern.permute.xlu0 0
    %844 = vperm.xlu0 %843, %v618
    %v845 = vpop.permute.xlu0 %844
    %848 = vset.pattern.permute.xlu0 0
    %849 = vperm.xlu0 %848, %v619
    %v850 = vpop.permute.xlu0 %849
    %853 = vset.pattern.permute.xlu0 0
    %854 = vperm.xlu0 %853, %v620
    %v855 = vpop.permute.xlu0 %854
    %858 = vset.pattern.permute.xlu0 0
    %859 = vperm.xlu0 %858, %v621
    %v860 = vpop.permute.xlu0 %859
    %863 = vset.pattern.permute.xlu0 0
    %864 = vperm.xlu0 %863, %v622
    %v865 = vpop.permute.xlu0 %864
    %868 = vset.pattern.permute.xlu0 0
    %869 = vperm.xlu0 %868, %v623
    %v870 = vpop.permute.xlu0 %869
    %873 = vset.pattern.permute.xlu0 0
    %874 = vperm.xlu0 %873, %v624
    %v875 = vpop.permute.xlu0 %874
    %878 = vset.pattern.permute.xlu0 0
    %879 = vperm.xlu0 %878, %v625
    %v880 = vpop.permute.xlu0 %879
    %883 = vset.pattern.permute.xlu0 0
    %884 = vperm.xlu0 %883, %v626
    %v885 = vpop.permute.xlu0 %884
    %888 = vset.pattern.permute.xlu0 0
    %889 = vperm.xlu0 %888, %v627
    %v890 = vpop.permute.xlu0 %889
    %893 = vset.pattern.permute.xlu0 0
    %894 = vperm.xlu0 %893, %v628
    %v895 = vpop.permute.xlu0 %894
    %898 = vset.pattern.permute.xlu0 0
    %899 = vperm.xlu0 %898, %v629
    %v900 = vpop.permute.xlu0 %899
    %903 = vset.pattern.permute.xlu0 0
    %904 = vperm.xlu0 %903, %v630
    %v905 = vpop.permute.xlu0 %904
    %908 = vset.pattern.permute.xlu0 0
    %909 = vperm.xlu0 %908, %v631
    %v910 = vpop.permute.xlu0 %909
    %913 = vset.pattern.permute.xlu0 0
    %914 = vperm.xlu0 %913, %v632
    %v915 = vpop.permute.xlu0 %914
    %918 = vset.pattern.permute.xlu0 0
    %919 = vperm.xlu0 %918, %v633
    %v920 = vpop.permute.xlu0 %919
    %923 = vset.pattern.permute.xlu0 0
    %924 = vperm.xlu0 %923, %v634
    %v925 = vpop.permute.xlu0 %924
    %928 = vset.pattern.permute.xlu0 0
    %929 = vperm.xlu0 %928, %v635
    %v930 = vpop.permute.xlu0 %929
    %933 = vset.pattern.permute.xlu0 0
    %934 = vperm.xlu0 %933, %v636
    %v935 = vpop.permute.xlu0 %934
    %938 = vset.pattern.permute.xlu0 0
    %939 = vperm.xlu0 %938, %v637
    %v940 = vpop.permute.xlu0 %939
    %943 = vset.pattern.permute.xlu0 0
    %944 = vperm.xlu0 %943, %v638
    %v945 = vpop.permute.xlu0 %944
    %948 = vset.pattern.permute.xlu0 0
    %949 = vperm.xlu0 %948, %v639
    %v950 = vpop.permute.xlu0 %949
    %953 = vset.pattern.permute.xlu0 0
    %954 = vperm.xlu0 %953, %v640
    %v955 = vpop.permute.xlu0 %954
    %958 = vset.pattern.permute.xlu0 0
    %959 = vperm.xlu0 %958, %v641
    %v960 = vpop.permute.xlu0 %959
    %963 = vset.pattern.permute.xlu0 0
    %964 = vperm.xlu0 %963, %v642
    %v965 = vpop.permute.xlu0 %964
    %968 = vset.pattern.permute.xlu0 0
    %969 = vperm.xlu0 %968, %v643
    %v970 = vpop.permute.xlu0 %969
    %973 = vset.pattern.permute.xlu0 0
    %974 = vperm.xlu0 %973, %v644
    %v975 = vpop.permute.xlu0 %974
    %978 = vset.pattern.permute.xlu0 0
    %979 = vperm.xlu0 %978, %v645
    %v980 = vpop.permute.xlu0 %979
    %983 = vset.pattern.permute.xlu0 0
    %984 = vperm.xlu0 %983, %v646
    %v985 = vpop.permute.xlu0 %984
    %988 = vset.pattern.permute.xlu0 0
    %989 = vperm.xlu0 %988, %v647
    %v990 = vpop.permute.xlu0 %989
    %993 = vset.pattern.permute.xlu0 0
    %994 = vperm.xlu0 %993, %v648
    %v995 = vpop.permute.xlu0 %994
    %998 = vset.pattern.permute.xlu0 0
    %999 = vperm.xlu0 %998, %v649
    %v1000 = vpop.permute.xlu0 %999
    %1003 = vset.pattern.permute.xlu0 0
    %1004 = vperm.xlu0 %1003, %v650
    %v1005 = vpop.permute.xlu0 %1004
    %1008 = vset.pattern.permute.xlu0 0
    %1009 = vperm.xlu0 %1008, %v651
    %v1010 = vpop.permute.xlu0 %1009
    %1013 = vset.pattern.permute.xlu0 0
    %1014 = vperm.xlu0 %1013, %v652
    %v1015 = vpop.permute.xlu0 %1014
    %1018 = vset.pattern.permute.xlu0 0
    %1019 = vperm.xlu0 %1018, %v653
    %v1020 = vpop.permute.xlu0 %1019
    %1023 = vset.pattern.permute.xlu0 0
    %1024 = vperm.xlu0 %1023, %v654
    %v1025 = vpop.permute.xlu0 %1024
    %1028 = vset.pattern.permute.xlu0 0
    %1029 = vperm.xlu0 %1028, %v655
    %v1030 = vpop.permute.xlu0 %1029
    %1033 = vset.pattern.permute.xlu0 0
    %1034 = vperm.xlu0 %1033, %v656
    %v1035 = vpop.permute.xlu0 %1034
    %1038 = vset.pattern.permute.xlu0 0
    %1039 = vperm.xlu0 %1038, %v657
    %v1040 = vpop.permute.xlu0 %1039
    %1043 = vset.pattern.permute.xlu0 0
    %1044 = vperm.xlu0 %1043, %v658
    %v1045 = vpop.permute.xlu0 %1044
    %1048 = vset.pattern.permute.xlu0 0
    %1049 = vperm.xlu0 %1048, %v659
    %v1050 = vpop.permute.xlu0 %1049
    %1053 = vset.pattern.permute.xlu0 0
    %1054 = vperm.xlu0 %1053, %v660
    %v1055 = vpop.permute.xlu0 %1054
    %1058 = vset.pattern.permute.xlu0 0
    %1059 = vperm.xlu0 %1058, %v661
    %v1060 = vpop.permute.xlu0 %1059
    %1063 = vset.pattern.permute.xlu0 0
    %1064 = vperm.xlu0 %1063, %v662
    %v1065 = vpop.permute.xlu0 %1064
    %1068 = vset.pattern.permute.xlu0 0
    %1069 = vperm.xlu0 %1068, %v663
    %v1070 = vpop.permute.xlu0 %1069
    %1073 = vset.pattern.permute.xlu0 0
    %1074 = vperm.xlu0 %1073, %v664
    %v1075 = vpop.permute.xlu0 %1074
    %1078 = vset.pattern.permute.xlu0 0
    %1079 = vperm.xlu0 %1078, %v665
    %v1080 = vpop.permute.xlu0 %1079
    %1083 = vset.pattern.permute.xlu0 0
    %1084 = vperm.xlu0 %1083, %v666
    %v1085 = vpop.permute.xlu0 %1084
    %1088 = vset.pattern.permute.xlu0 0
    %1089 = vperm.xlu0 %1088, %v667
    %v1090 = vpop.permute.xlu0 %1089
    %1093 = vset.pattern.permute.xlu0 0
    %1094 = vperm.xlu0 %1093, %v668
    %v1095 = vpop.permute.xlu0 %1094
    %1098 = vset.pattern.permute.xlu0 0
    %1099 = vperm.xlu0 %1098, %v669
    %v1100 = vpop.permute.xlu0 %1099
    %1103 = vset.pattern.permute.xlu0 0
    %1104 = vperm.xlu0 %1103, %v670
    %v1105 = vpop.permute.xlu0 %1104
    %1108 = vset.pattern.permute.xlu0 0
    %1109 = vperm.xlu0 %1108, %v671
    %v1110 = vpop.permute.xlu0 %1109
    %1113 = vset.pattern.permute.xlu0 0
    %1114 = vperm.xlu0 %1113, %v672
    %v1115 = vpop.permute.xlu0 %1114
    %1118 = vset.pattern.permute.xlu0 0
    %1119 = vperm.xlu0 %1118, %v673
    %v1120 = vpop.permute.xlu0 %1119
    %1123 = vset.pattern.permute.xlu0 0
    %1124 = vperm.xlu0 %1123, %v674
    %v1125 = vpop.permute.xlu0 %1124
    %1128 = vset.pattern.permute.xlu0 0
    %1129 = vperm.xlu0 %1128, %v675
    %v1130 = vpop.permute.xlu0 %1129
    %1133 = vset.pattern.permute.xlu0 0
    %1134 = vperm.xlu0 %1133, %v676
    %v1135 = vpop.permute.xlu0 %1134
    %1138 = vset.pattern.permute.xlu0 0
    %1139 = vperm.xlu0 %1138, %v677
    %v1140 = vpop.permute.xlu0 %1139
    %1143 = vset.pattern.permute.xlu0 0
    %1144 = vperm.xlu0 %1143, %v678
    %v1145 = vpop.permute.xlu0 %1144
    %1148 = vset.pattern.permute.xlu0 0
    %1149 = vperm.xlu0 %1148, %v679
    %v1150 = vpop.permute.xlu0 %1149
    %1153 = vset.pattern.permute.xlu0 0
    %1154 = vperm.xlu0 %1153, %v680
    %v1155 = vpop.permute.xlu0 %1154
    %1158 = vset.pattern.permute.xlu0 0
    %1159 = vperm.xlu0 %1158, %v681
    %v1160 = vpop.permute.xlu0 %1159
    %1163 = vset.pattern.permute.xlu0 0
    %1164 = vperm.xlu0 %1163, %v682
    %v1165 = vpop.permute.xlu0 %1164
    %1168 = vset.pattern.permute.xlu0 0
    %1169 = vperm.xlu0 %1168, %v683
    %v1170 = vpop.permute.xlu0 %1169
    %1173 = vset.pattern.permute.xlu0 0
    %1174 = vperm.xlu0 %1173, %v684
    %v1175 = vpop.permute.xlu0 %1174
    %1178 = vset.pattern.permute.xlu0 0
    %1179 = vperm.xlu0 %1178, %v685
    %v1180 = vpop.permute.xlu0 %1179
    %1183 = vset.pattern.permute.xlu0 0
    %1184 = vperm.xlu0 %1183, %v686
    %v1185 = vpop.permute.xlu0 %1184
    %1188 = vset.pattern.permute.xlu0 0
    %1189 = vperm.xlu0 %1188, %v687
    %v1190 = vpop.permute.xlu0 %1189
    %1193 = vset.pattern.permute.xlu0 0
    %1194 = vperm.xlu0 %1193, %v688
    %v1195 = vpop.permute.xlu0 %1194
    %1198 = vset.pattern.permute.xlu0 0
    %1199 = vperm.xlu0 %1198, %v689
    %v1200 = vpop.permute.xlu0 %1199
    %1203 = vset.pattern.permute.xlu0 0
    %1204 = vperm.xlu0 %1203, %v690
    %v1205 = vpop.permute.xlu0 %1204
    %1208 = vset.pattern.permute.xlu0 0
    %1209 = vperm.xlu0 %1208, %v691
    %v1210 = vpop.permute.xlu0 %1209
    %1213 = vset.pattern.permute.xlu0 0
    %1214 = vperm.xlu0 %1213, %v692
    %v1215 = vpop.permute.xlu0 %1214
    %1218 = vset.pattern.permute.xlu0 0
    %1219 = vperm.xlu0 %1218, %v693
    %v1220 = vpop.permute.xlu0 %1219
    %1223 = vset.pattern.permute.xlu0 0
    %1224 = vperm.xlu0 %1223, %v694
    %v1225 = vpop.permute.xlu0 %1224
    %1228 = vset.pattern.permute.xlu0 0
    %1229 = vperm.xlu0 %1228, %v695
    %v1230 = vpop.permute.xlu0 %1229
    %1233 = vset.pattern.permute.xlu0 0
    %1234 = vperm.xlu0 %1233, %v696
    %v1235 = vpop.permute.xlu0 %1234
    %1238 = vset.pattern.permute.xlu0 0
    %1239 = vperm.xlu0 %1238, %v697
    %v1240 = vpop.permute.xlu0 %1239
    %1243 = vset.pattern.permute.xlu0 0
    %1244 = vperm.xlu0 %1243, %v698
    %v1245 = vpop.permute.xlu0 %1244
    %1248 = vset.pattern.permute.xlu0 0
    %1249 = vperm.xlu0 %1248, %v699
    %v1250 = vpop.permute.xlu0 %1249
    %1253 = vset.pattern.permute.xlu0 0
    %1254 = vperm.xlu0 %1253, %v700
    %v1255 = vpop.permute.xlu0 %1254
    %1258 = vset.pattern.permute.xlu0 0
    %1259 = vperm.xlu0 %1258, %v701
    %v1260 = vpop.permute.xlu0 %1259
    %1263 = vset.pattern.permute.xlu0 0
    %1264 = vperm.xlu0 %1263, %v702
    %v1265 = vpop.permute.xlu0 %1264
    %1268 = vset.pattern.permute.xlu0 0
    %1269 = vperm.xlu0 %1268, %v703
    %v1270 = vpop.permute.xlu0 %1269
    %1273 = vset.pattern.permute.xlu0 0
    %1274 = vperm.xlu0 %1273, %v704
    %v1275 = vpop.permute.xlu0 %1274
    %1278 = vset.pattern.permute.xlu0 0
    %1279 = vperm.xlu0 %1278, %v705
    %v1280 = vpop.permute.xlu0 %1279
    %1283 = vset.pattern.permute.xlu0 0
    %1284 = vperm.xlu0 %1283, %v706
    %v1285 = vpop.permute.xlu0 %1284
    %1288 = vset.pattern.permute.xlu0 0
    %1289 = vperm.xlu0 %1288, %v707
    %v1290 = vpop.permute.xlu0 %1289
    %1293 = vset.pattern.permute.xlu0 0
    %1294 = vperm.xlu0 %1293, %v708
    %v1295 = vpop.permute.xlu0 %1294
    %1298 = vset.pattern.permute.xlu0 0
    %1299 = vperm.xlu0 %1298, %v709
    %v1300 = vpop.permute.xlu0 %1299
    %1303 = vset.pattern.permute.xlu0 0
    %1304 = vperm.xlu0 %1303, %v710
    %v1305 = vpop.permute.xlu0 %1304
    %1308 = vset.pattern.permute.xlu0 0
    %1309 = vperm.xlu0 %1308, %v711
    %v1310 = vpop.permute.xlu0 %1309
    %1313 = vset.pattern.permute.xlu0 0
    %1314 = vperm.xlu0 %1313, %v712
    %v1315 = vpop.permute.xlu0 %1314
    %1318 = vset.pattern.permute.xlu0 0
    %1319 = vperm.xlu0 %1318, %v713
    %v1320 = vpop.permute.xlu0 %1319
    %1323 = vset.pattern.permute.xlu0 0
    %1324 = vperm.xlu0 %1323, %v714
    %v1325 = vpop.permute.xlu0 %1324
    %1328 = vset.pattern.permute.xlu0 0
    %1329 = vperm.xlu0 %1328, %v715
    %v1330 = vpop.permute.xlu0 %1329
    %1333 = vset.pattern.permute.xlu0 0
    %1334 = vperm.xlu0 %1333, %v716
    %v1335 = vpop.permute.xlu0 %1334
    %1338 = vset.pattern.permute.xlu0 0
    %1339 = vperm.xlu0 %1338, %v717
    %v1340 = vpop.permute.xlu0 %1339
    %1343 = vset.pattern.permute.xlu0 0
    %1344 = vperm.xlu0 %1343, %v718
    %v1345 = vpop.permute.xlu0 %1344
    %1348 = vset.pattern.permute.xlu0 0
    %1349 = vperm.xlu0 %1348, %v719
    %v1350 = vpop.permute.xlu0 %1349
    %1353 = vset.pattern.permute.xlu0 0
    %1354 = vperm.xlu0 %1353, %v720
    %v1355 = vpop.permute.xlu0 %1354
    %1358 = vset.pattern.permute.xlu0 0
    %1359 = vperm.xlu0 %1358, %v721
    %v1360 = vpop.permute.xlu0 %1359
    %v1490 = vunpack.c.l.b16 %v466
    %v1491 = vunpack.c.l.b16 %v467
    %v1492 = vunpack.c.l.b16 %v468
    %v1493 = vunpack.c.l.b16 %v469
    %v1494 = vunpack.c.l.b16 %v470
    %v1495 = vunpack.c.l.b16 %v471
    %v1496 = vunpack.c.l.b16 %v472
    %v1497 = vunpack.c.l.b16 %v473
    %v1498 = vunpack.c.l.b16 %v474
    %v1499 = vunpack.c.l.b16 %v475
    %v1500 = vunpack.c.l.b16 %v476
    %v1501 = vunpack.c.l.b16 %v477
    %v1502 = vunpack.c.l.b16 %v478
    %v1503 = vunpack.c.l.b16 %v479
    %v1504 = vunpack.c.l.b16 %v480
    %v1505 = vunpack.c.l.b16 %v481
    %v1506 = vunpack.c.l.b16 %v482
    %v1507 = vunpack.c.l.b16 %v483
    %v1508 = vunpack.c.l.b16 %v484
    %v1509 = vunpack.c.l.b16 %v485
    %v1510 = vunpack.c.l.b16 %v486
    %v1511 = vunpack.c.l.b16 %v487
    %v1512 = vunpack.c.l.b16 %v488
    %v1513 = vunpack.c.l.b16 %v489
    %v1514 = vunpack.c.l.b16 %v490
    %v1515 = vunpack.c.l.b16 %v491
    %v1516 = vunpack.c.l.b16 %v492
    %v1517 = vunpack.c.l.b16 %v493
    %v1518 = vunpack.c.l.b16 %v494
    %v1519 = vunpack.c.l.b16 %v495
    %v1520 = vunpack.c.l.b16 %v496
    %v1521 = vunpack.c.l.b16 %v497
    %v1522 = vunpack.c.l.b16 %v498
    %v1523 = vunpack.c.l.b16 %v499
    %v1524 = vunpack.c.l.b16 %v500
    %v1525 = vunpack.c.l.b16 %v501
    %v1526 = vunpack.c.l.b16 %v502
    %v1527 = vunpack.c.l.b16 %v503
    %v1528 = vunpack.c.l.b16 %v504
    %v1529 = vunpack.c.l.b16 %v505
    %v1530 = vunpack.c.l.b16 %v506
    %v1531 = vunpack.c.l.b16 %v507
    %v1532 = vunpack.c.l.b16 %v508
    %v1533 = vunpack.c.l.b16 %v509
    %v1534 = vunpack.c.l.b16 %v510
    %v1535 = vunpack.c.l.b16 %v511
    %v1536 = vunpack.c.l.b16 %v512
    %v1537 = vunpack.c.l.b16 %v513
    %v1538 = vunpack.c.l.b16 %v514
    %v1539 = vunpack.c.l.b16 %v515
    %v1540 = vunpack.c.l.b16 %v516
    %v1541 = vunpack.c.l.b16 %v517
    %v1542 = vunpack.c.l.b16 %v518
    %v1543 = vunpack.c.l.b16 %v519
    %v1544 = vunpack.c.l.b16 %v520
    %v1545 = vunpack.c.l.b16 %v521
    %v1546 = vunpack.c.l.b16 %v522
    %v1547 = vunpack.c.l.b16 %v523
    %v1548 = vunpack.c.l.b16 %v524
    %v1549 = vunpack.c.l.b16 %v525
    %v1550 = vunpack.c.l.b16 %v526
    %v1551 = vunpack.c.l.b16 %v527
    %v1552 = vunpack.c.l.b16 %v528
    %v1553 = vunpack.c.l.b16 %v529
    %v1554 = vunpack.c.l.b16 %v530
    %v1555 = vunpack.c.l.b16 %v531
    %v1556 = vunpack.c.l.b16 %v532
    %v1557 = vunpack.c.l.b16 %v533
    %v1558 = vunpack.c.l.b16 %v534
    %v1559 = vunpack.c.l.b16 %v535
    %v1560 = vunpack.c.l.b16 %v536
    %v1561 = vunpack.c.l.b16 %v537
    %v1562 = vunpack.c.l.b16 %v538
    %v1563 = vunpack.c.l.b16 %v539
    %v1564 = vunpack.c.l.b16 %v540
    %v1565 = vunpack.c.l.b16 %v541
    %v1566 = vunpack.c.l.b16 %v542
    %v1567 = vunpack.c.l.b16 %v543
    %v1568 = vunpack.c.l.b16 %v544
    %v1569 = vunpack.c.l.b16 %v545
    %v1570 = vunpack.c.l.b16 %v546
    %v1571 = vunpack.c.l.b16 %v547
    %v1572 = vunpack.c.l.b16 %v548
    %v1573 = vunpack.c.l.b16 %v549
    %v1574 = vunpack.c.l.b16 %v550
    %v1575 = vunpack.c.l.b16 %v551
    %v1576 = vunpack.c.l.b16 %v552
    %v1577 = vunpack.c.l.b16 %v553
    %v1578 = vunpack.c.l.b16 %v554
    %v1579 = vunpack.c.l.b16 %v555
    %v1580 = vunpack.c.l.b16 %v556
    %v1581 = vunpack.c.l.b16 %v557
    %v1582 = vunpack.c.l.b16 %v558
    %v1583 = vunpack.c.l.b16 %v559
    %v1584 = vunpack.c.l.b16 %v560
    %v1585 = vunpack.c.l.b16 %v561
    %v1586 = vunpack.c.l.b16 %v562
    %v1587 = vunpack.c.l.b16 %v563
    %v1588 = vunpack.c.l.b16 %v564
    %v1589 = vunpack.c.l.b16 %v565
    %v1590 = vunpack.c.l.b16 %v566
    %v1591 = vunpack.c.l.b16 %v567
    %v1592 = vunpack.c.l.b16 %v568
    %v1593 = vunpack.c.l.b16 %v569
    %v1594 = vunpack.c.l.b16 %v570
    %v1595 = vunpack.c.l.b16 %v571
    %v1596 = vunpack.c.l.b16 %v572
    %v1597 = vunpack.c.l.b16 %v573
    %v1598 = vunpack.c.l.b16 %v574
    %v1599 = vunpack.c.l.b16 %v575
    %v1600 = vunpack.c.l.b16 %v576
    %v1601 = vunpack.c.l.b16 %v577
    %v1602 = vunpack.c.l.b16 %v578
    %v1603 = vunpack.c.l.b16 %v579
    %v1604 = vunpack.c.l.b16 %v580
    %v1605 = vunpack.c.l.b16 %v581
    %v1606 = vunpack.c.l.b16 %v582
    %v1607 = vunpack.c.l.b16 %v583
    %v1608 = vunpack.c.l.b16 %v584
    %v1609 = vunpack.c.l.b16 %v585
    %v1610 = vunpack.c.l.b16 %v586
    %v1611 = vunpack.c.l.b16 %v587
    %v1612 = vunpack.c.l.b16 %v588
    %v1613 = vunpack.c.l.b16 %v589
    %v1614 = vunpack.c.l.b16 %v590
    %v1615 = vunpack.c.l.b16 %v591
    %v1616 = vunpack.c.l.b16 %v592
    %v1617 = vunpack.c.l.b16 %v593
    %v1618 = vpack.c.b16 %v1491, %v1490
    %v1619 = vpack.c.b16 %v1493, %v1492
    %v1620 = vpack.c.b16 %v1495, %v1494
    %v1621 = vpack.c.b16 %v1497, %v1496
    %v1622 = vpack.c.b16 %v1499, %v1498
    %v1623 = vpack.c.b16 %v1501, %v1500
    %v1624 = vpack.c.b16 %v1503, %v1502
    %v1625 = vpack.c.b16 %v1505, %v1504
    %v1626 = vpack.c.b16 %v1507, %v1506
    %v1627 = vpack.c.b16 %v1509, %v1508
    %v1628 = vpack.c.b16 %v1511, %v1510
    %v1629 = vpack.c.b16 %v1513, %v1512
    %v1630 = vpack.c.b16 %v1515, %v1514
    %v1631 = vpack.c.b16 %v1517, %v1516
    %v1632 = vpack.c.b16 %v1519, %v1518
    %v1633 = vpack.c.b16 %v1521, %v1520
    %v1634 = vpack.c.b16 %v1523, %v1522
    %v1635 = vpack.c.b16 %v1525, %v1524
    %v1636 = vpack.c.b16 %v1527, %v1526
    %v1637 = vpack.c.b16 %v1529, %v1528
    %v1638 = vpack.c.b16 %v1531, %v1530
    %v1639 = vpack.c.b16 %v1533, %v1532
    %v1640 = vpack.c.b16 %v1535, %v1534
    %v1641 = vpack.c.b16 %v1537, %v1536
    %v1642 = vpack.c.b16 %v1539, %v1538
    %v1643 = vpack.c.b16 %v1541, %v1540
    %v1644 = vpack.c.b16 %v1543, %v1542
    %v1645 = vpack.c.b16 %v1545, %v1544
    %v1646 = vpack.c.b16 %v1547, %v1546
    %v1647 = vpack.c.b16 %v1549, %v1548
    %v1648 = vpack.c.b16 %v1551, %v1550
    %v1649 = vpack.c.b16 %v1553, %v1552
    %v1650 = vpack.c.b16 %v1555, %v1554
    %v1651 = vpack.c.b16 %v1557, %v1556
    %v1652 = vpack.c.b16 %v1559, %v1558
    %v1653 = vpack.c.b16 %v1561, %v1560
    %v1654 = vpack.c.b16 %v1563, %v1562
    %v1655 = vpack.c.b16 %v1565, %v1564
    %v1656 = vpack.c.b16 %v1567, %v1566
    %v1657 = vpack.c.b16 %v1569, %v1568
    %v1658 = vpack.c.b16 %v1571, %v1570
    %v1659 = vpack.c.b16 %v1573, %v1572
    %v1660 = vpack.c.b16 %v1575, %v1574
    %v1661 = vpack.c.b16 %v1577, %v1576
    %v1662 = vpack.c.b16 %v1579, %v1578
    %v1663 = vpack.c.b16 %v1581, %v1580
    %v1664 = vpack.c.b16 %v1583, %v1582
    %v1665 = vpack.c.b16 %v1585, %v1584
    %v1666 = vpack.c.b16 %v1587, %v1586
    %v1667 = vpack.c.b16 %v1589, %v1588
    %v1668 = vpack.c.b16 %v1591, %v1590
    %v1669 = vpack.c.b16 %v1593, %v1592
    %v1670 = vpack.c.b16 %v1595, %v1594
    %v1671 = vpack.c.b16 %v1597, %v1596
    %v1672 = vpack.c.b16 %v1599, %v1598
    %v1673 = vpack.c.b16 %v1601, %v1600
    %v1674 = vpack.c.b16 %v1603, %v1602
    %v1675 = vpack.c.b16 %v1605, %v1604
    %v1676 = vpack.c.b16 %v1607, %v1606
    %v1677 = vpack.c.b16 %v1609, %v1608
    %v1678 = vpack.c.b16 %v1611, %v1610
    %v1679 = vpack.c.b16 %v1613, %v1612
    %v1680 = vpack.c.b16 %v1615, %v1614
    %v1681 = vpack.c.b16 %v1617, %v1616
    %vm1682 = vcmask 228352
    %v1684 = vsel %vm1682, %v1618, 0
    %v1687 = vsel %vm1682, %v1619, 0
    %v1690 = vsel %vm1682, %v1620, 0
    %v1693 = vsel %vm1682, %v1621, 0
    %v1696 = vsel %vm1682, %v1622, 0
    %v1699 = vsel %vm1682, %v1623, 0
    %v1702 = vsel %vm1682, %v1624, 0
    %v1705 = vsel %vm1682, %v1625, 0
    %v1708 = vsel %vm1682, %v1626, 0
    %v1711 = vsel %vm1682, %v1627, 0
    %v1714 = vsel %vm1682, %v1628, 0
    %v1717 = vsel %vm1682, %v1629, 0
    %v1720 = vsel %vm1682, %v1630, 0
    %v1723 = vsel %vm1682, %v1631, 0
    %v1726 = vsel %vm1682, %v1632, 0
    %v1729 = vsel %vm1682, %v1633, 0
    %v1732 = vsel %vm1682, %v1634, 0
    %v1735 = vsel %vm1682, %v1635, 0
    %v1738 = vsel %vm1682, %v1636, 0
    %v1741 = vsel %vm1682, %v1637, 0
    %v1744 = vsel %vm1682, %v1638, 0
    %v1747 = vsel %vm1682, %v1639, 0
    %v1750 = vsel %vm1682, %v1640, 0
    %v1753 = vsel %vm1682, %v1641, 0
    %v1756 = vsel %vm1682, %v1642, 0
    %v1759 = vsel %vm1682, %v1643, 0
    %v1762 = vsel %vm1682, %v1644, 0
    %v1765 = vsel %vm1682, %v1645, 0
    %v1768 = vsel %vm1682, %v1646, 0
    %v1771 = vsel %vm1682, %v1647, 0
    %v1774 = vsel %vm1682, %v1648, 0
    %v1777 = vsel %vm1682, %v1649, 0
    %v1780 = vsel %vm1682, %v1650, 0
    %v1783 = vsel %vm1682, %v1651, 0
    %v1786 = vsel %vm1682, %v1652, 0
    %v1789 = vsel %vm1682, %v1653, 0
    %v1792 = vsel %vm1682, %v1654, 0
    %v1795 = vsel %vm1682, %v1655, 0
    %v1798 = vsel %vm1682, %v1656, 0
    %v1801 = vsel %vm1682, %v1657, 0
    %v1804 = vsel %vm1682, %v1658, 0
    %v1807 = vsel %vm1682, %v1659, 0
    %v1810 = vsel %vm1682, %v1660, 0
    %v1813 = vsel %vm1682, %v1661, 0
    %v1816 = vsel %vm1682, %v1662, 0
    %v1819 = vsel %vm1682, %v1663, 0
    %v1822 = vsel %vm1682, %v1664, 0
    %v1825 = vsel %vm1682, %v1665, 0
    %v1828 = vsel %vm1682, %v1666, 0
    %v1831 = vsel %vm1682, %v1667, 0
    %v1834 = vsel %vm1682, %v1668, 0
    %v1837 = vsel %vm1682, %v1669, 0
    %v1840 = vsel %vm1682, %v1670, 0
    %v1843 = vsel %vm1682, %v1671, 0
    %v1846 = vsel %vm1682, %v1672, 0
    %v1849 = vsel %vm1682, %v1673, 0
    %v1852 = vsel %vm1682, %v1674, 0
    %v1855 = vsel %vm1682, %v1675, 0
    %v1858 = vsel %vm1682, %v1676, 0
    %v1861 = vsel %vm1682, %v1677, 0
    %v1864 = vsel %vm1682, %v1678, 0
    %v1867 = vsel %vm1682, %v1679, 0
    %v1870 = vsel %vm1682, %v1680, 0
    %v1873 = vsel %vm1682, %v1681, 0
    %vm1875 = vcmask 1045504
    %v1877 = vsel %vm1875, %v465, 0
    %1879 = vmatprep.subr.bf16.mxu0 0
    %1880 = vmatpush1.bf16.msra.mxu0 %v464
    %1881 = vmatprep.subr.bf16.mxu0 0
    %1882 = vmatpush1.bf16.msra.mxu0 %v1877
    %1883 = vmatprep.subr.bf16.mxu0 0
    %1884 = vmatpush1.bf16.msra.mxu0 0
    %1885 = vmatprep.subr.bf16.mxu0 0
    %1886 = vmatpush1.bf16.msra.mxu0 0
    %1887 = vmatprep.subr.bf16.mxu0 0
    %1888 = vmatpush1.bf16.msra.mxu0 0
    %1889 = vmatprep.subr.bf16.mxu0 0
    %1890 = vmatpush1.bf16.msra.mxu0 0
    %1891 = vmatprep.subr.bf16.mxu0 0
    %1892 = vmatpush1.bf16.msra.mxu0 0
    %1893 = vmatprep.subr.bf16.mxu0 0
    %1894 = vmatpush1.bf16.msra.mxu0 0
    %1895 = vmatprep.subr.bf16.mxu0 0
    %1896 = vmatpush1.bf16.msra.mxu0 0
    %1897 = vmatprep.subr.bf16.mxu0 0
    %1898 = vmatpush1.bf16.msra.mxu0 0
    %1899 = vmatprep.subr.bf16.mxu0 0
    %1900 = vmatpush1.bf16.msra.mxu0 0
    %1901 = vmatprep.subr.bf16.mxu0 0
    %1902 = vmatpush1.bf16.msra.mxu0 0
    %1903 = vmatprep.subr.bf16.mxu0 0
    %1904 = vmatpush1.bf16.msra.mxu0 0
    %1905 = vmatprep.subr.bf16.mxu0 0
    %1906 = vmatpush1.bf16.msra.mxu0 0
    %1907 = vmatprep.subr.bf16.mxu0 0
    %1908 = vmatpush1.bf16.msra.mxu0 0
    %1909 = vmatprep.subr.bf16.mxu0 0
    %1910 = vmatpush1.bf16.msra.mxu0 0
    %1911 = vmatprep.mubr.bf16.mxu0 0
    %1912 = vmatmul.mubr.bf16.gmra.mrb[0].mxu0 %v1684
    %v1913 = vpop.f32.mrb[0].mxu0
    %v1914 = vadd.f32 %v725, %v1913
    %v1915 = vpop.f32.mrb[0].mxu0
    %v1916 = vpop.f32.mrb[0].mxu0
    %v1917 = vadd.f32 %v730, %v1916
    %v1918 = vpop.f32.mrb[0].mxu0
    %1919 = vmatprep.mubr.bf16.mxu0 0
    %1920 = vmatmul.mubr.bf16.gmra.mrb[0].mxu0 %v1687
    %v1921 = vpop.f32.mrb[0].mxu0
    %v1922 = vadd.f32 %v735, %v1921
    %v1923 = vpop.f32.mrb[0].mxu0
    %v1924 = vpop.f32.mrb[0].mxu0
    %v1925 = vadd.f32 %v740, %v1924
    %v1926 = vpop.f32.mrb[0].mxu0
    %1927 = vmatprep.mubr.bf16.mxu0 0
    %1928 = vmatmul.mubr.bf16.gmra.mrb[0].mxu0 %v1690
    %v1929 = vpop.f32.mrb[0].mxu0
    %v1930 = vadd.f32 %v745, %v1929
    %v1931 = vpop.f32.mrb[0].mxu0
    %v1932 = vpop.f32.mrb[0].mxu0
    %v1933 = vadd.f32 %v750, %v1932
    %v1934 = vpop.f32.mrb[0].mxu0
    %1935 = vmatprep.mubr.bf16.mxu0 0
    %1936 = vmatmul.mubr.bf16.gmra.mrb[0].mxu0 %v1693
    %v1937 = vpop.f32.mrb[0].mxu0
    %v1938 = vadd.f32 %v755, %v1937
    %v1939 = vpop.f32.mrb[0].mxu0
    %v1940 = vpop.f32.mrb[0].mxu0
    %v1941 = vadd.f32 %v760, %v1940
    %v1942 = vpop.f32.mrb[0].mxu0
    %1943 = vmatprep.mubr.bf16.mxu0 0
    %1944 = vmatmul.mubr.bf16.gmra.mrb[0].mxu0 %v1696
    %v1945 = vpop.f32.mrb[0].mxu0
    %v1946 = vadd.f32 %v765, %v1945
    %v1947 = vpop.f32.mrb[0].mxu0
    %v1948 = vpop.f32.mrb[0].mxu0
    %v1949 = vadd.f32 %v770, %v1948
    %v1950 = vpop.f32.mrb[0].mxu0
    %1951 = vmatprep.mubr.bf16.mxu0 0
    %1952 = vmatmul.mubr.bf16.gmra.mrb[0].mxu0 %v1699
    %v1953 = vpop.f32.mrb[0].mxu0
    %v1954 = vadd.f32 %v775, %v1953
    %v1955 = vpop.f32.mrb[0].mxu0
    %v1956 = vpop.f32.mrb[0].mxu0
    %v1957 = vadd.f32 %v780, %v1956
    %v1958 = vpop.f32.mrb[0].mxu0
    %1959 = vmatprep.mubr.bf16.mxu0 0
    %1960 = vmatmul.mubr.bf16.gmra.mrb[0].mxu0 %v1702
    %v1961 = vpop.f32.mrb[0].mxu0
    %v1962 = vadd.f32 %v785, %v1961
    %v1963 = vpop.f32.mrb[0].mxu0
    %v1964 = vpop.f32.mrb[0].mxu0
    %v1965 = vadd.f32 %v790, %v1964
    %v1966 = vpop.f32.mrb[0].mxu0
    %1967 = vmatprep.mubr.bf16.mxu0 0
    %1968 = vmatmul.mubr.bf16.gmra.mrb[0].mxu0 %v1705
    %v1969 = vpop.f32.mrb[0].mxu0
    %v1970 = vadd.f32 %v795, %v1969
    %v1971 = vpop.f32.mrb[0].mxu0
    %v1972 = vpop.f32.mrb[0].mxu0
    %v1973 = vadd.f32 %v800, %v1972
    %v1974 = vpop.f32.mrb[0].mxu0
    %1975 = vmatprep.mubr.bf16.mxu0 0
    %1976 = vmatmul.mubr.bf16.gmra.mrb[0].mxu0 %v1708
    %v1977 = vpop.f32.mrb[0].mxu0
    %v1978 = vadd.f32 %v805, %v1977
    %v1979 = vpop.f32.mrb[0].mxu0
    %v1980 = vpop.f32.mrb[0].mxu0
    %v1981 = vadd.f32 %v810, %v1980
    %v1982 = vpop.f32.mrb[0].mxu0
    %1983 = vmatprep.mubr.bf16.mxu0 0
    %1984 = vmatmul.mubr.bf16.gmra.mrb[0].mxu0 %v1711
    %v1985 = vpop.f32.mrb[0].mxu0
    %v1986 = vadd.f32 %v815, %v1985
    %v1987 = vpop.f32.mrb[0].mxu0
    %v1988 = vpop.f32.mrb[0].mxu0
    %v1989 = vadd.f32 %v820, %v1988
    %v1990 = vpop.f32.mrb[0].mxu0
    %1991 = vmatprep.mubr.bf16.mxu0 0
    %1992 = vmatmul.mubr.bf16.gmra.mrb[0].mxu0 %v1714
    %v1993 = vpop.f32.mrb[0].mxu0
    %v1994 = vadd.f32 %v825, %v1993
    %v1995 = vpop.f32.mrb[0].mxu0
    %v1996 = vpop.f32.mrb[0].mxu0
    %v1997 = vadd.f32 %v830, %v1996
    %v1998 = vpop.f32.mrb[0].mxu0
    %1999 = vmatprep.mubr.bf16.mxu0 0
    %2000 = vmatmul.mubr.bf16.gmra.mrb[0].mxu0 %v1717
    %v2001 = vpop.f32.mrb[0].mxu0
    %v2002 = vadd.f32 %v835, %v2001
    %v2003 = vpop.f32.mrb[0].mxu0
    %v2004 = vpop.f32.mrb[0].mxu0
    %v2005 = vadd.f32 %v840, %v2004
    %v2006 = vpop.f32.mrb[0].mxu0
    %2007 = vmatprep.mubr.bf16.mxu0 0
    %2008 = vmatmul.mubr.bf16.gmra.mrb[0].mxu0 %v1720
    %v2009 = vpop.f32.mrb[0].mxu0
    %v2010 = vadd.f32 %v845, %v2009
    %v2011 = vpop.f32.mrb[0].mxu0
    %v2012 = vpop.f32.mrb[0].mxu0
    %v2013 = vadd.f32 %v850, %v2012
    %v2014 = vpop.f32.mrb[0].mxu0
    %2015 = vmatprep.mubr.bf16.mxu0 0
    %2016 = vmatmul.mubr.bf16.gmra.mrb[0].mxu0 %v1723
    %v2017 = vpop.f32.mrb[0].mxu0
    %v2018 = vadd.f32 %v855, %v2017
    %v2019 = vpop.f32.mrb[0].mxu0
    %v2020 = vpop.f32.mrb[0].mxu0
    %v2021 = vadd.f32 %v860, %v2020
    %v2022 = vpop.f32.mrb[0].mxu0
    %2023 = vmatprep.mubr.bf16.mxu0 0
    %2024 = vmatmul.mubr.bf16.gmra.mrb[0].mxu0 %v1726
    %v2025 = vpop.f32.mrb[0].mxu0
    %v2026 = vadd.f32 %v865, %v2025
    %v2027 = vpop.f32.mrb[0].mxu0
    %v2028 = vpop.f32.mrb[0].mxu0
    %v2029 = vadd.f32 %v870, %v2028
    %v2030 = vpop.f32.mrb[0].mxu0
    %2031 = vmatprep.mubr.bf16.mxu0 0
    %2032 = vmatmul.mubr.bf16.gmra.mrb[0].mxu0 %v1729
    %v2033 = vpop.f32.mrb[0].mxu0
    %v2034 = vadd.f32 %v875, %v2033
    %v2035 = vpop.f32.mrb[0].mxu0
    %v2036 = vpop.f32.mrb[0].mxu0
    %v2037 = vadd.f32 %v880, %v2036
    %v2038 = vpop.f32.mrb[0].mxu0
    %2039 = vmatprep.mubr.bf16.mxu0 0
    %2040 = vmatmul.mubr.bf16.gmra.mrb[0].mxu0 %v1732
    %v2041 = vpop.f32.mrb[0].mxu0
    %v2042 = vadd.f32 %v885, %v2041
    %v2043 = vpop.f32.mrb[0].mxu0
    %v2044 = vpop.f32.mrb[0].mxu0
    %v2045 = vadd.f32 %v890, %v2044
    %v2046 = vpop.f32.mrb[0].mxu0
    %2047 = vmatprep.mubr.bf16.mxu0 0
    %2048 = vmatmul.mubr.bf16.gmra.mrb[0].mxu0 %v1735
    %v2049 = vpop.f32.mrb[0].mxu0
    %v2050 = vadd.f32 %v895, %v2049
    %v2051 = vpop.f32.mrb[0].mxu0
    %v2052 = vpop.f32.mrb[0].mxu0
    %v2053 = vadd.f32 %v900, %v2052
    %v2054 = vpop.f32.mrb[0].mxu0
    %2055 = vmatprep.mubr.bf16.mxu0 0
    %2056 = vmatmul.mubr.bf16.gmra.mrb[0].mxu0 %v1738
    %v2057 = vpop.f32.mrb[0].mxu0
    %v2058 = vadd.f32 %v905, %v2057
    %v2059 = vpop.f32.mrb[0].mxu0
    %v2060 = vpop.f32.mrb[0].mxu0
    %v2061 = vadd.f32 %v910, %v2060
    %v2062 = vpop.f32.mrb[0].mxu0
    %2063 = vmatprep.mubr.bf16.mxu0 0
    %2064 = vmatmul.mubr.bf16.gmra.mrb[0].mxu0 %v1741
    %v2065 = vpop.f32.mrb[0].mxu0
    %v2066 = vadd.f32 %v915, %v2065
    %v2067 = vpop.f32.mrb[0].mxu0
    %v2068 = vpop.f32.mrb[0].mxu0
    %v2069 = vadd.f32 %v920, %v2068
    %v2070 = vpop.f32.mrb[0].mxu0
    %2071 = vmatprep.mubr.bf16.mxu0 0
    %2072 = vmatmul.mubr.bf16.gmra.mrb[0].mxu0 %v1744
    %v2073 = vpop.f32.mrb[0].mxu0
    %v2074 = vadd.f32 %v925, %v2073
    %v2075 = vpop.f32.mrb[0].mxu0
    %v2076 = vpop.f32.mrb[0].mxu0
    %v2077 = vadd.f32 %v930, %v2076
    %v2078 = vpop.f32.mrb[0].mxu0
    %2079 = vmatprep.mubr.bf16.mxu0 0
    %2080 = vmatmul.mubr.bf16.gmra.mrb[0].mxu0 %v1747
    %v2081 = vpop.f32.mrb[0].mxu0
    %v2082 = vadd.f32 %v935, %v2081
    %v2083 = vpop.f32.mrb[0].mxu0
    %v2084 = vpop.f32.mrb[0].mxu0
    %v2085 = vadd.f32 %v940, %v2084
    %v2086 = vpop.f32.mrb[0].mxu0
    %2087 = vmatprep.mubr.bf16.mxu0 0
    %2088 = vmatmul.mubr.bf16.gmra.mrb[0].mxu0 %v1750
    %v2089 = vpop.f32.mrb[0].mxu0
    %v2090 = vadd.f32 %v945, %v2089
    %v2091 = vpop.f32.mrb[0].mxu0
    %v2092 = vpop.f32.mrb[0].mxu0
    %v2093 = vadd.f32 %v950, %v2092
    %v2094 = vpop.f32.mrb[0].mxu0
    %2095 = vmatprep.mubr.bf16.mxu0 0
    %2096 = vmatmul.mubr.bf16.gmra.mrb[0].mxu0 %v1753
    %v2097 = vpop.f32.mrb[0].mxu0
    %v2098 = vadd.f32 %v955, %v2097
    %v2099 = vpop.f32.mrb[0].mxu0
    %v2100 = vpop.f32.mrb[0].mxu0
    %v2101 = vadd.f32 %v960, %v2100
    %v2102 = vpop.f32.mrb[0].mxu0
    %2103 = vmatprep.mubr.bf16.mxu0 0
    %2104 = vmatmul.mubr.bf16.gmra.mrb[0].mxu0 %v1756
    %v2105 = vpop.f32.mrb[0].mxu0
    %v2106 = vadd.f32 %v965, %v2105
    %v2107 = vpop.f32.mrb[0].mxu0
    %v2108 = vpop.f32.mrb[0].mxu0
    %v2109 = vadd.f32 %v970, %v2108
    %v2110 = vpop.f32.mrb[0].mxu0
    %2111 = vmatprep.mubr.bf16.mxu0 0
    %2112 = vmatmul.mubr.bf16.gmra.mrb[0].mxu0 %v1759
    %v2113 = vpop.f32.mrb[0].mxu0
    %v2114 = vadd.f32 %v975, %v2113
    %v2115 = vpop.f32.mrb[0].mxu0
    %v2116 = vpop.f32.mrb[0].mxu0
    %v2117 = vadd.f32 %v980, %v2116
    %v2118 = vpop.f32.mrb[0].mxu0
    %2119 = vmatprep.mubr.bf16.mxu0 0
    %2120 = vmatmul.mubr.bf16.gmra.mrb[0].mxu0 %v1762
    %v2121 = vpop.f32.mrb[0].mxu0
    %v2122 = vadd.f32 %v985, %v2121
    %v2123 = vpop.f32.mrb[0].mxu0
    %v2124 = vpop.f32.mrb[0].mxu0
    %v2125 = vadd.f32 %v990, %v2124
    %v2126 = vpop.f32.mrb[0].mxu0
    %2127 = vmatprep.mubr.bf16.mxu0 0
    %2128 = vmatmul.mubr.bf16.gmra.mrb[0].mxu0 %v1765
    %v2129 = vpop.f32.mrb[0].mxu0
    %v2130 = vadd.f32 %v995, %v2129
    %v2131 = vpop.f32.mrb[0].mxu0
    %v2132 = vpop.f32.mrb[0].mxu0
    %v2133 = vadd.f32 %v1000, %v2132
    %v2134 = vpop.f32.mrb[0].mxu0
    %2135 = vmatprep.mubr.bf16.mxu0 0
    %2136 = vmatmul.mubr.bf16.gmra.mrb[0].mxu0 %v1768
    %v2137 = vpop.f32.mrb[0].mxu0
    %v2138 = vadd.f32 %v1005, %v2137
    %v2139 = vpop.f32.mrb[0].mxu0
    %v2140 = vpop.f32.mrb[0].mxu0
    %v2141 = vadd.f32 %v1010, %v2140
    %v2142 = vpop.f32.mrb[0].mxu0
    %2143 = vmatprep.mubr.bf16.mxu0 0
    %2144 = vmatmul.mubr.bf16.gmra.mrb[0].mxu0 %v1771
    %v2145 = vpop.f32.mrb[0].mxu0
    %v2146 = vadd.f32 %v1015, %v2145
    %v2147 = vpop.f32.mrb[0].mxu0
    %v2148 = vpop.f32.mrb[0].mxu0
    %v2149 = vadd.f32 %v1020, %v2148
    %v2150 = vpop.f32.mrb[0].mxu0
    %2151 = vmatprep.mubr.bf16.mxu0 0
    %2152 = vmatmul.mubr.bf16.gmra.mrb[0].mxu0 %v1774
    %v2153 = vpop.f32.mrb[0].mxu0
    %v2154 = vadd.f32 %v1025, %v2153
    %v2155 = vpop.f32.mrb[0].mxu0
    %v2156 = vpop.f32.mrb[0].mxu0
    %v2157 = vadd.f32 %v1030, %v2156
    %v2158 = vpop.f32.mrb[0].mxu0
    %2159 = vmatprep.mubr.bf16.mxu0 0
    %2160 = vmatmul.mubr.bf16.gmra.mrb[0].mxu0 %v1777
    %v2161 = vpop.f32.mrb[0].mxu0
    %v2162 = vadd.f32 %v1035, %v2161
    %v2163 = vpop.f32.mrb[0].mxu0
    %v2164 = vpop.f32.mrb[0].mxu0
    %v2165 = vadd.f32 %v1040, %v2164
    %v2166 = vpop.f32.mrb[0].mxu0
    %2167 = vmatprep.mubr.bf16.mxu0 0
    %2168 = vmatmul.mubr.bf16.gmra.mrb[0].mxu0 %v1780
    %v2169 = vpop.f32.mrb[0].mxu0
    %v2170 = vadd.f32 %v1045, %v2169
    %v2171 = vpop.f32.mrb[0].mxu0
    %v2172 = vpop.f32.mrb[0].mxu0
    %v2173 = vadd.f32 %v1050, %v2172
    %v2174 = vpop.f32.mrb[0].mxu0
    %2175 = vmatprep.mubr.bf16.mxu0 0
    %2176 = vmatmul.mubr.bf16.gmra.mrb[0].mxu0 %v1783
    %v2177 = vpop.f32.mrb[0].mxu0
    %v2178 = vadd.f32 %v1055, %v2177
    %v2179 = vpop.f32.mrb[0].mxu0
    %v2180 = vpop.f32.mrb[0].mxu0
    %v2181 = vadd.f32 %v1060, %v2180
    %v2182 = vpop.f32.mrb[0].mxu0
    %2183 = vmatprep.mubr.bf16.mxu0 0
    %2184 = vmatmul.mubr.bf16.gmra.mrb[0].mxu0 %v1786
    %v2185 = vpop.f32.mrb[0].mxu0
    %v2186 = vadd.f32 %v1065, %v2185
    %v2187 = vpop.f32.mrb[0].mxu0
    %v2188 = vpop.f32.mrb[0].mxu0
    %v2189 = vadd.f32 %v1070, %v2188
    %v2190 = vpop.f32.mrb[0].mxu0
    %2191 = vmatprep.mubr.bf16.mxu0 0
    %2192 = vmatmul.mubr.bf16.gmra.mrb[0].mxu0 %v1789
    %v2193 = vpop.f32.mrb[0].mxu0
    %v2194 = vadd.f32 %v1075, %v2193
    %v2195 = vpop.f32.mrb[0].mxu0
    %v2196 = vpop.f32.mrb[0].mxu0
    %v2197 = vadd.f32 %v1080, %v2196
    %v2198 = vpop.f32.mrb[0].mxu0
    %2199 = vmatprep.mubr.bf16.mxu0 0
    %2200 = vmatmul.mubr.bf16.gmra.mrb[0].mxu0 %v1792
    %v2201 = vpop.f32.mrb[0].mxu0
    %v2202 = vadd.f32 %v1085, %v2201
    %v2203 = vpop.f32.mrb[0].mxu0
    %v2204 = vpop.f32.mrb[0].mxu0
    %v2205 = vadd.f32 %v1090, %v2204
    %v2206 = vpop.f32.mrb[0].mxu0
    %2207 = vmatprep.mubr.bf16.mxu0 0
    %2208 = vmatmul.mubr.bf16.gmra.mrb[0].mxu0 %v1795
    %v2209 = vpop.f32.mrb[0].mxu0
    %v2210 = vadd.f32 %v1095, %v2209
    %v2211 = vpop.f32.mrb[0].mxu0
    %v2212 = vpop.f32.mrb[0].mxu0
    %v2213 = vadd.f32 %v1100, %v2212
    %v2214 = vpop.f32.mrb[0].mxu0
    %2215 = vmatprep.mubr.bf16.mxu0 0
    %2216 = vmatmul.mubr.bf16.gmra.mrb[0].mxu0 %v1798
    %v2217 = vpop.f32.mrb[0].mxu0
    %v2218 = vadd.f32 %v1105, %v2217
    %v2219 = vpop.f32.mrb[0].mxu0
    %v2220 = vpop.f32.mrb[0].mxu0
    %v2221 = vadd.f32 %v1110, %v2220
    %v2222 = vpop.f32.mrb[0].mxu0
    %2223 = vmatprep.mubr.bf16.mxu0 0
    %2224 = vmatmul.mubr.bf16.gmra.mrb[0].mxu0 %v1801
    %v2225 = vpop.f32.mrb[0].mxu0
    %v2226 = vadd.f32 %v1115, %v2225
    %v2227 = vpop.f32.mrb[0].mxu0
    %v2228 = vpop.f32.mrb[0].mxu0
    %v2229 = vadd.f32 %v1120, %v2228
    %v2230 = vpop.f32.mrb[0].mxu0
    %2231 = vmatprep.mubr.bf16.mxu0 0
    %2232 = vmatmul.mubr.bf16.gmra.mrb[0].mxu0 %v1804
    %v2233 = vpop.f32.mrb[0].mxu0
    %v2234 = vadd.f32 %v1125, %v2233
    %v2235 = vpop.f32.mrb[0].mxu0
    %v2236 = vpop.f32.mrb[0].mxu0
    %v2237 = vadd.f32 %v1130, %v2236
    %v2238 = vpop.f32.mrb[0].mxu0
    %2239 = vmatprep.mubr.bf16.mxu0 0
    %2240 = vmatmul.mubr.bf16.gmra.mrb[0].mxu0 %v1807
    %v2241 = vpop.f32.mrb[0].mxu0
    %v2242 = vadd.f32 %v1135, %v2241
    %v2243 = vpop.f32.mrb[0].mxu0
    %v2244 = vpop.f32.mrb[0].mxu0
    %v2245 = vadd.f32 %v1140, %v2244
    %v2246 = vpop.f32.mrb[0].mxu0
    %2247 = vmatprep.mubr.bf16.mxu0 0
    %2248 = vmatmul.mubr.bf16.gmra.mrb[0].mxu0 %v1810
    %v2249 = vpop.f32.mrb[0].mxu0
    %v2250 = vadd.f32 %v1145, %v2249
    %v2251 = vpop.f32.mrb[0].mxu0
    %v2252 = vpop.f32.mrb[0].mxu0
    %v2253 = vadd.f32 %v1150, %v2252
    %v2254 = vpop.f32.mrb[0].mxu0
    %2255 = vmatprep.mubr.bf16.mxu0 0
    %2256 = vmatmul.mubr.bf16.gmra.mrb[0].mxu0 %v1813
    %v2257 = vpop.f32.mrb[0].mxu0
    %v2258 = vadd.f32 %v1155, %v2257
    %v2259 = vpop.f32.mrb[0].mxu0
    %v2260 = vpop.f32.mrb[0].mxu0
    %v2261 = vadd.f32 %v1160, %v2260
    %v2262 = vpop.f32.mrb[0].mxu0
    %2263 = vmatprep.mubr.bf16.mxu0 0
    %2264 = vmatmul.mubr.bf16.gmra.mrb[0].mxu0 %v1816
    %v2265 = vpop.f32.mrb[0].mxu0
    %v2266 = vadd.f32 %v1165, %v2265
    %v2267 = vpop.f32.mrb[0].mxu0
    %v2268 = vpop.f32.mrb[0].mxu0
    %v2269 = vadd.f32 %v1170, %v2268
    %v2270 = vpop.f32.mrb[0].mxu0
    %2271 = vmatprep.mubr.bf16.mxu0 0
    %2272 = vmatmul.mubr.bf16.gmra.mrb[0].mxu0 %v1819
    %v2273 = vpop.f32.mrb[0].mxu0
    %v2274 = vadd.f32 %v1175, %v2273
    %v2275 = vpop.f32.mrb[0].mxu0
    %v2276 = vpop.f32.mrb[0].mxu0
    %v2277 = vadd.f32 %v1180, %v2276
    %v2278 = vpop.f32.mrb[0].mxu0
    %2279 = vmatprep.mubr.bf16.mxu0 0
    %2280 = vmatmul.mubr.bf16.gmra.mrb[0].mxu0 %v1822
    %v2281 = vpop.f32.mrb[0].mxu0
    %v2282 = vadd.f32 %v1185, %v2281
    %v2283 = vpop.f32.mrb[0].mxu0
    %v2284 = vpop.f32.mrb[0].mxu0
    %v2285 = vadd.f32 %v1190, %v2284
    %v2286 = vpop.f32.mrb[0].mxu0
    %2287 = vmatprep.mubr.bf16.mxu0 0
    %2288 = vmatmul.mubr.bf16.gmra.mrb[0].mxu0 %v1825
    %v2289 = vpop.f32.mrb[0].mxu0
    %v2290 = vadd.f32 %v1195, %v2289
    %v2291 = vpop.f32.mrb[0].mxu0
    %v2292 = vpop.f32.mrb[0].mxu0
    %v2293 = vadd.f32 %v1200, %v2292
    %v2294 = vpop.f32.mrb[0].mxu0
    %2295 = vmatprep.mubr.bf16.mxu0 0
    %2296 = vmatmul.mubr.bf16.gmra.mrb[0].mxu0 %v1828
    %v2297 = vpop.f32.mrb[0].mxu0
    %v2298 = vadd.f32 %v1205, %v2297
    %v2299 = vpop.f32.mrb[0].mxu0
    %v2300 = vpop.f32.mrb[0].mxu0
    %v2301 = vadd.f32 %v1210, %v2300
    %v2302 = vpop.f32.mrb[0].mxu0
    %2303 = vmatprep.mubr.bf16.mxu0 0
    %2304 = vmatmul.mubr.bf16.gmra.mrb[0].mxu0 %v1831
    %v2305 = vpop.f32.mrb[0].mxu0
    %v2306 = vadd.f32 %v1215, %v2305
    %v2307 = vpop.f32.mrb[0].mxu0
    %v2308 = vpop.f32.mrb[0].mxu0
    %v2309 = vadd.f32 %v1220, %v2308
    %v2310 = vpop.f32.mrb[0].mxu0
    %2311 = vmatprep.mubr.bf16.mxu0 0
    %2312 = vmatmul.mubr.bf16.gmra.mrb[0].mxu0 %v1834
    %v2313 = vpop.f32.mrb[0].mxu0
    %v2314 = vadd.f32 %v1225, %v2313
    %v2315 = vpop.f32.mrb[0].mxu0
    %v2316 = vpop.f32.mrb[0].mxu0
    %v2317 = vadd.f32 %v1230, %v2316
    %v2318 = vpop.f32.mrb[0].mxu0
    %2319 = vmatprep.mubr.bf16.mxu0 0
    %2320 = vmatmul.mubr.bf16.gmra.mrb[0].mxu0 %v1837
    %v2321 = vpop.f32.mrb[0].mxu0
    %v2322 = vadd.f32 %v1235, %v2321
    %v2323 = vpop.f32.mrb[0].mxu0
    %v2324 = vpop.f32.mrb[0].mxu0
    %v2325 = vadd.f32 %v1240, %v2324
    %v2326 = vpop.f32.mrb[0].mxu0
    %2327 = vmatprep.mubr.bf16.mxu0 0
    %2328 = vmatmul.mubr.bf16.gmra.mrb[0].mxu0 %v1840
    %v2329 = vpop.f32.mrb[0].mxu0
    %v2330 = vadd.f32 %v1245, %v2329
    %v2331 = vpop.f32.mrb[0].mxu0
    %v2332 = vpop.f32.mrb[0].mxu0
    %v2333 = vadd.f32 %v1250, %v2332
    %v2334 = vpop.f32.mrb[0].mxu0
    %2335 = vmatprep.mubr.bf16.mxu0 0
    %2336 = vmatmul.mubr.bf16.gmra.mrb[0].mxu0 %v1843
    %v2337 = vpop.f32.mrb[0].mxu0
    %v2338 = vadd.f32 %v1255, %v2337
    %v2339 = vpop.f32.mrb[0].mxu0
    %v2340 = vpop.f32.mrb[0].mxu0
    %v2341 = vadd.f32 %v1260, %v2340
    %v2342 = vpop.f32.mrb[0].mxu0
    %2343 = vmatprep.mubr.bf16.mxu0 0
    %2344 = vmatmul.mubr.bf16.gmra.mrb[0].mxu0 %v1846
    %v2345 = vpop.f32.mrb[0].mxu0
    %v2346 = vadd.f32 %v1265, %v2345
    %v2347 = vpop.f32.mrb[0].mxu0
    %v2348 = vpop.f32.mrb[0].mxu0
    %v2349 = vadd.f32 %v1270, %v2348
    %v2350 = vpop.f32.mrb[0].mxu0
    %2351 = vmatprep.mubr.bf16.mxu0 0
    %2352 = vmatmul.mubr.bf16.gmra.mrb[0].mxu0 %v1849
    %v2353 = vpop.f32.mrb[0].mxu0
    %v2354 = vadd.f32 %v1275, %v2353
    %v2355 = vpop.f32.mrb[0].mxu0
    %v2356 = vpop.f32.mrb[0].mxu0
    %v2357 = vadd.f32 %v1280, %v2356
    %v2358 = vpop.f32.mrb[0].mxu0
    %2359 = vmatprep.mubr.bf16.mxu0 0
    %2360 = vmatmul.mubr.bf16.gmra.mrb[0].mxu0 %v1852
    %v2361 = vpop.f32.mrb[0].mxu0
    %v2362 = vadd.f32 %v1285, %v2361
    %v2363 = vpop.f32.mrb[0].mxu0
    %v2364 = vpop.f32.mrb[0].mxu0
    %v2365 = vadd.f32 %v1290, %v2364
    %v2366 = vpop.f32.mrb[0].mxu0
    %2367 = vmatprep.mubr.bf16.mxu0 0
    %2368 = vmatmul.mubr.bf16.gmra.mrb[0].mxu0 %v1855
    %v2369 = vpop.f32.mrb[0].mxu0
    %v2370 = vadd.f32 %v1295, %v2369
    %v2371 = vpop.f32.mrb[0].mxu0
    %v2372 = vpop.f32.mrb[0].mxu0
    %v2373 = vadd.f32 %v1300, %v2372
    %v2374 = vpop.f32.mrb[0].mxu0
    %2375 = vmatprep.mubr.bf16.mxu0 0
    %2376 = vmatmul.mubr.bf16.gmra.mrb[0].mxu0 %v1858
    %v2377 = vpop.f32.mrb[0].mxu0
    %v2378 = vadd.f32 %v1305, %v2377
    %v2379 = vpop.f32.mrb[0].mxu0
    %v2380 = vpop.f32.mrb[0].mxu0
    %v2381 = vadd.f32 %v1310, %v2380
    %v2382 = vpop.f32.mrb[0].mxu0
    %2383 = vmatprep.mubr.bf16.mxu0 0
    %2384 = vmatmul.mubr.bf16.gmra.mrb[0].mxu0 %v1861
    %v2385 = vpop.f32.mrb[0].mxu0
    %v2386 = vadd.f32 %v1315, %v2385
    %v2387 = vpop.f32.mrb[0].mxu0
    %v2388 = vpop.f32.mrb[0].mxu0
    %v2389 = vadd.f32 %v1320, %v2388
    %v2390 = vpop.f32.mrb[0].mxu0
    %2391 = vmatprep.mubr.bf16.mxu0 0
    %2392 = vmatmul.mubr.bf16.gmra.mrb[0].mxu0 %v1864
    %v2393 = vpop.f32.mrb[0].mxu0
    %v2394 = vadd.f32 %v1325, %v2393
    %v2395 = vpop.f32.mrb[0].mxu0
    %v2396 = vpop.f32.mrb[0].mxu0
    %v2397 = vadd.f32 %v1330, %v2396
    %v2398 = vpop.f32.mrb[0].mxu0
    %2399 = vmatprep.mubr.bf16.mxu0 0
    %2400 = vmatmul.mubr.bf16.gmra.mrb[0].mxu0 %v1867
    %v2401 = vpop.f32.mrb[0].mxu0
    %v2402 = vadd.f32 %v1335, %v2401
    %v2403 = vpop.f32.mrb[0].mxu0
    %v2404 = vpop.f32.mrb[0].mxu0
    %v2405 = vadd.f32 %v1340, %v2404
    %v2406 = vpop.f32.mrb[0].mxu0
    %2407 = vmatprep.mubr.bf16.mxu0 0
    %2408 = vmatmul.mubr.bf16.gmra.mrb[0].mxu0 %v1870
    %v2409 = vpop.f32.mrb[0].mxu0
    %v2410 = vadd.f32 %v1345, %v2409
    %v2411 = vpop.f32.mrb[0].mxu0
    %v2412 = vpop.f32.mrb[0].mxu0
    %v2413 = vadd.f32 %v1350, %v2412
    %v2414 = vpop.f32.mrb[0].mxu0
    %2415 = vmatprep.mubr.bf16.mxu0 0
    %2416 = vmatmul.mubr.bf16.gmra.mrb[0].mxu0 %v1873
    %v2417 = vpop.f32.mrb[0].mxu0
    %v2418 = vadd.f32 %v1355, %v2417
    %v2419 = vpop.f32.mrb[0].mxu0
    %v2420 = vpop.f32.mrb[0].mxu0
    %v2421 = vadd.f32 %v1360, %v2420
    %v2422 = vpop.f32.mrb[0].mxu0
    %2423 = vdwg.mxu0
    %v2424 = vsub.f32 0.0, %v1914
    %v2425 = vsub.f32 0.0, %v1917
    %v2426 = vsub.f32 0.0, %v1922
    %v2427 = vsub.f32 0.0, %v1925
    %v2428 = vsub.f32 0.0, %v1930
    %v2429 = vsub.f32 0.0, %v1933
    %v2430 = vsub.f32 0.0, %v1938
    %v2431 = vsub.f32 0.0, %v1941
    %v2432 = vsub.f32 0.0, %v1946
    %v2433 = vsub.f32 0.0, %v1949
    %v2434 = vsub.f32 0.0, %v1954
    %v2435 = vsub.f32 0.0, %v1957
    %v2436 = vsub.f32 0.0, %v1962
    %v2437 = vsub.f32 0.0, %v1965
    %v2438 = vsub.f32 0.0, %v1970
    %v2439 = vsub.f32 0.0, %v1973
    %v2440 = vsub.f32 0.0, %v1978
    %v2441 = vsub.f32 0.0, %v1981
    %v2442 = vsub.f32 0.0, %v1986
    %v2443 = vsub.f32 0.0, %v1989
    %v2444 = vsub.f32 0.0, %v1994
    %v2445 = vsub.f32 0.0, %v1997
    %v2446 = vsub.f32 0.0, %v2002
    %v2447 = vsub.f32 0.0, %v2005
    %v2448 = vsub.f32 0.0, %v2010
    %v2449 = vsub.f32 0.0, %v2013
    %v2450 = vsub.f32 0.0, %v2018
    %v2451 = vsub.f32 0.0, %v2021
    %v2452 = vsub.f32 0.0, %v2026
    %v2453 = vsub.f32 0.0, %v2029
    %v2454 = vsub.f32 0.0, %v2034
    %v2455 = vsub.f32 0.0, %v2037
    %v2456 = vsub.f32 0.0, %v2042
    %v2457 = vsub.f32 0.0, %v2045
    %v2458 = vsub.f32 0.0, %v2050
    %v2459 = vsub.f32 0.0, %v2053
    %v2460 = vsub.f32 0.0, %v2058
    %v2461 = vsub.f32 0.0, %v2061
    %v2462 = vsub.f32 0.0, %v2066
    %v2463 = vsub.f32 0.0, %v2069
    %v2464 = vsub.f32 0.0, %v2074
    %v2465 = vsub.f32 0.0, %v2077
    %v2466 = vsub.f32 0.0, %v2082
    %v2467 = vsub.f32 0.0, %v2085
    %v2468 = vsub.f32 0.0, %v2090
    %v2469 = vsub.f32 0.0, %v2093
    %v2470 = vsub.f32 0.0, %v2098
    %v2471 = vsub.f32 0.0, %v2101
    %v2472 = vsub.f32 0.0, %v2106
    %v2473 = vsub.f32 0.0, %v2109
    %v2474 = vsub.f32 0.0, %v2114
    %v2475 = vsub.f32 0.0, %v2117
    %v2476 = vsub.f32 0.0, %v2122
    %v2477 = vsub.f32 0.0, %v2125
    %v2478 = vsub.f32 0.0, %v2130
    %v2479 = vsub.f32 0.0, %v2133
    %v2480 = vsub.f32 0.0, %v2138
    %v2481 = vsub.f32 0.0, %v2141
    %v2482 = vsub.f32 0.0, %v2146
    %v2483 = vsub.f32 0.0, %v2149
    %v2484 = vsub.f32 0.0, %v2154
    %v2485 = vsub.f32 0.0, %v2157
    %v2486 = vsub.f32 0.0, %v2162
    %v2487 = vsub.f32 0.0, %v2165
    %v2488 = vsub.f32 0.0, %v2170
    %v2489 = vsub.f32 0.0, %v2173
    %v2490 = vsub.f32 0.0, %v2178
    %v2491 = vsub.f32 0.0, %v2181
    %v2492 = vsub.f32 0.0, %v2186
    %v2493 = vsub.f32 0.0, %v2189
    %v2494 = vsub.f32 0.0, %v2194
    %v2495 = vsub.f32 0.0, %v2197
    %v2496 = vsub.f32 0.0, %v2202
    %v2497 = vsub.f32 0.0, %v2205
    %v2498 = vsub.f32 0.0, %v2210
    %v2499 = vsub.f32 0.0, %v2213
    %v2500 = vsub.f32 0.0, %v2218
    %v2501 = vsub.f32 0.0, %v2221
    %v2502 = vsub.f32 0.0, %v2226
    %v2503 = vsub.f32 0.0, %v2229
    %v2504 = vsub.f32 0.0, %v2234
    %v2505 = vsub.f32 0.0, %v2237
    %v2506 = vsub.f32 0.0, %v2242
    %v2507 = vsub.f32 0.0, %v2245
    %v2508 = vsub.f32 0.0, %v2250
    %v2509 = vsub.f32 0.0, %v2253
    %v2510 = vsub.f32 0.0, %v2258
    %v2511 = vsub.f32 0.0, %v2261
    %v2512 = vsub.f32 0.0, %v2266
    %v2513 = vsub.f32 0.0, %v2269
    %v2514 = vsub.f32 0.0, %v2274
    %v2515 = vsub.f32 0.0, %v2277
    %v2516 = vsub.f32 0.0, %v2282
    %v2517 = vsub.f32 0.0, %v2285
    %v2518 = vsub.f32 0.0, %v2290
    %v2519 = vsub.f32 0.0, %v2293
    %v2520 = vsub.f32 0.0, %v2298
    %v2521 = vsub.f32 0.0, %v2301
    %v2522 = vsub.f32 0.0, %v2306
    %v2523 = vsub.f32 0.0, %v2309
    %v2524 = vsub.f32 0.0, %v2314
    %v2525 = vsub.f32 0.0, %v2317
    %v2526 = vsub.f32 0.0, %v2322
    %v2527 = vsub.f32 0.0, %v2325
    %v2528 = vsub.f32 0.0, %v2330
    %v2529 = vsub.f32 0.0, %v2333
    %v2530 = vsub.f32 0.0, %v2338
    %v2531 = vsub.f32 0.0, %v2341
    %v2532 = vsub.f32 0.0, %v2346
    %v2533 = vsub.f32 0.0, %v2349
    %v2534 = vsub.f32 0.0, %v2354
    %v2535 = vsub.f32 0.0, %v2357
    %v2536 = vsub.f32 0.0, %v2362
    %v2537 = vsub.f32 0.0, %v2365
    %v2538 = vsub.f32 0.0, %v2370
    %v2539 = vsub.f32 0.0, %v2373
    %v2540 = vsub.f32 0.0, %v2378
    %v2541 = vsub.f32 0.0, %v2381
    %v2542 = vsub.f32 0.0, %v2386
    %v2543 = vsub.f32 0.0, %v2389
    %v2544 = vsub.f32 0.0, %v2394
    %v2545 = vsub.f32 0.0, %v2397
    %v2546 = vsub.f32 0.0, %v2402
    %v2547 = vsub.f32 0.0, %v2405
    %v2548 = vsub.f32 0.0, %v2410
    %v2549 = vsub.f32 0.0, %v2413
    %v2550 = vsub.f32 0.0, %v2418
    %v2551 = vsub.f32 0.0, %v2421
    %v2552 = vmul.f32 %v2424, 1.442695
    %v2553 = vpow.pop %v2552
    %v2554 = vmul.f32 %v2425, 1.442695
    %v2555 = vpow.pop %v2554
    %v2556 = vmul.f32 %v2426, 1.442695
    %v2557 = vpow.pop %v2556
    %v2558 = vmul.f32 %v2427, 1.442695
    %v2559 = vpow.pop %v2558
    %v2560 = vmul.f32 %v2428, 1.442695
    %v2561 = vpow.pop %v2560
    %v2562 = vmul.f32 %v2429, 1.442695
    %v2563 = vpow.pop %v2562
    %v2564 = vmul.f32 %v2430, 1.442695
    %v2565 = vpow.pop %v2564
    %v2566 = vmul.f32 %v2431, 1.442695
    %v2567 = vpow.pop %v2566
    %v2568 = vmul.f32 %v2432, 1.442695
    %v2569 = vpow.pop %v2568
    %v2570 = vmul.f32 %v2433, 1.442695
    %v2571 = vpow.pop %v2570
    %v2572 = vmul.f32 %v2434, 1.442695
    %v2573 = vpow.pop %v2572
    %v2574 = vmul.f32 %v2435, 1.442695
    %v2575 = vpow.pop %v2574
    %v2576 = vmul.f32 %v2436, 1.442695
    %v2577 = vpow.pop %v2576
    %v2578 = vmul.f32 %v2437, 1.442695
    %v2579 = vpow.pop %v2578
    %v2580 = vmul.f32 %v2438, 1.442695
    %v2581 = vpow.pop %v2580
    %v2582 = vmul.f32 %v2439, 1.442695
    %v2583 = vpow.pop %v2582
    %v2584 = vmul.f32 %v2440, 1.442695
    %v2585 = vpow.pop %v2584
    %v2586 = vmul.f32 %v2441, 1.442695
    %v2587 = vpow.pop %v2586
    %v2588 = vmul.f32 %v2442, 1.442695
    %v2589 = vpow.pop %v2588
    %v2590 = vmul.f32 %v2443, 1.442695
    %v2591 = vpow.pop %v2590
    %v2592 = vmul.f32 %v2444, 1.442695
    %v2593 = vpow.pop %v2592
    %v2594 = vmul.f32 %v2445, 1.442695
    %v2595 = vpow.pop %v2594
    %v2596 = vmul.f32 %v2446, 1.442695
    %v2597 = vpow.pop %v2596
    %v2598 = vmul.f32 %v2447, 1.442695
    %v2599 = vpow.pop %v2598
    %v2600 = vmul.f32 %v2448, 1.442695
    %v2601 = vpow.pop %v2600
    %v2602 = vmul.f32 %v2449, 1.442695
    %v2603 = vpow.pop %v2602
    %v2604 = vmul.f32 %v2450, 1.442695
    %v2605 = vpow.pop %v2604
    %v2606 = vmul.f32 %v2451, 1.442695
    %v2607 = vpow.pop %v2606
    %v2608 = vmul.f32 %v2452, 1.442695
    %v2609 = vpow.pop %v2608
    %v2610 = vmul.f32 %v2453, 1.442695
    %v2611 = vpow.pop %v2610
    %v2612 = vmul.f32 %v2454, 1.442695
    %v2613 = vpow.pop %v2612
    %v2614 = vmul.f32 %v2455, 1.442695
    %v2615 = vpow.pop %v2614
    %v2616 = vmul.f32 %v2456, 1.442695
    %v2617 = vpow.pop %v2616
    %v2618 = vmul.f32 %v2457, 1.442695
    %v2619 = vpow.pop %v2618
    %v2620 = vmul.f32 %v2458, 1.442695
    %v2621 = vpow.pop %v2620
    %v2622 = vmul.f32 %v2459, 1.442695
    %v2623 = vpow.pop %v2622
    %v2624 = vmul.f32 %v2460, 1.442695
    %v2625 = vpow.pop %v2624
    %v2626 = vmul.f32 %v2461, 1.442695
    %v2627 = vpow.pop %v2626
    %v2628 = vmul.f32 %v2462, 1.442695
    %v2629 = vpow.pop %v2628
    %v2630 = vmul.f32 %v2463, 1.442695
    %v2631 = vpow.pop %v2630
    %v2632 = vmul.f32 %v2464, 1.442695
    %v2633 = vpow.pop %v2632
    %v2634 = vmul.f32 %v2465, 1.442695
    %v2635 = vpow.pop %v2634
    %v2636 = vmul.f32 %v2466, 1.442695
    %v2637 = vpow.pop %v2636
    %v2638 = vmul.f32 %v2467, 1.442695
    %v2639 = vpow.pop %v2638
    %v2640 = vmul.f32 %v2468, 1.442695
    %v2641 = vpow.pop %v2640
    %v2642 = vmul.f32 %v2469, 1.442695
    %v2643 = vpow.pop %v2642
    %v2644 = vmul.f32 %v2470, 1.442695
    %v2645 = vpow.pop %v2644
    %v2646 = vmul.f32 %v2471, 1.442695
    %v2647 = vpow.pop %v2646
    %v2648 = vmul.f32 %v2472, 1.442695
    %v2649 = vpow.pop %v2648
    %v2650 = vmul.f32 %v2473, 1.442695
    %v2651 = vpow.pop %v2650
    %v2652 = vmul.f32 %v2474, 1.442695
    %v2653 = vpow.pop %v2652
    %v2654 = vmul.f32 %v2475, 1.442695
    %v2655 = vpow.pop %v2654
    %v2656 = vmul.f32 %v2476, 1.442695
    %v2657 = vpow.pop %v2656
    %v2658 = vmul.f32 %v2477, 1.442695
    %v2659 = vpow.pop %v2658
    %v2660 = vmul.f32 %v2478, 1.442695
    %v2661 = vpow.pop %v2660
    %v2662 = vmul.f32 %v2479, 1.442695
    %v2663 = vpow.pop %v2662
    %v2664 = vmul.f32 %v2480, 1.442695
    %v2665 = vpow.pop %v2664
    %v2666 = vmul.f32 %v2481, 1.442695
    %v2667 = vpow.pop %v2666
    %v2668 = vmul.f32 %v2482, 1.442695
    %v2669 = vpow.pop %v2668
    %v2670 = vmul.f32 %v2483, 1.442695
    %v2671 = vpow.pop %v2670
    %v2672 = vmul.f32 %v2484, 1.442695
    %v2673 = vpow.pop %v2672
    %v2674 = vmul.f32 %v2485, 1.442695
    %v2675 = vpow.pop %v2674
    %v2676 = vmul.f32 %v2486, 1.442695
    %v2677 = vpow.pop %v2676
    %v2678 = vmul.f32 %v2487, 1.442695
    %v2679 = vpow.pop %v2678
    %v2680 = vmul.f32 %v2488, 1.442695
    %v2681 = vpow.pop %v2680
    %v2682 = vmul.f32 %v2489, 1.442695
    %v2683 = vpow.pop %v2682
    %v2684 = vmul.f32 %v2490, 1.442695
    %v2685 = vpow.pop %v2684
    %v2686 = vmul.f32 %v2491, 1.442695
    %v2687 = vpow.pop %v2686
    %v2688 = vmul.f32 %v2492, 1.442695
    %v2689 = vpow.pop %v2688
    %v2690 = vmul.f32 %v2493, 1.442695
    %v2691 = vpow.pop %v2690
    %v2692 = vmul.f32 %v2494, 1.442695
    %v2693 = vpow.pop %v2692
    %v2694 = vmul.f32 %v2495, 1.442695
    %v2695 = vpow.pop %v2694
    %v2696 = vmul.f32 %v2496, 1.442695
    %v2697 = vpow.pop %v2696
    %v2698 = vmul.f32 %v2497, 1.442695
    %v2699 = vpow.pop %v2698
    %v2700 = vmul.f32 %v2498, 1.442695
    %v2701 = vpow.pop %v2700
    %v2702 = vmul.f32 %v2499, 1.442695
    %v2703 = vpow.pop %v2702
    %v2704 = vmul.f32 %v2500, 1.442695
    %v2705 = vpow.pop %v2704
    %v2706 = vmul.f32 %v2501, 1.442695
    %v2707 = vpow.pop %v2706
    %v2708 = vmul.f32 %v2502, 1.442695
    %v2709 = vpow.pop %v2708
    %v2710 = vmul.f32 %v2503, 1.442695
    %v2711 = vpow.pop %v2710
    %v2712 = vmul.f32 %v2504, 1.442695
    %v2713 = vpow.pop %v2712
    %v2714 = vmul.f32 %v2505, 1.442695
    %v2715 = vpow.pop %v2714
    %v2716 = vmul.f32 %v2506, 1.442695
    %v2717 = vpow.pop %v2716
    %v2718 = vmul.f32 %v2507, 1.442695
    %v2719 = vpow.pop %v2718
    %v2720 = vmul.f32 %v2508, 1.442695
    %v2721 = vpow.pop %v2720
    %v2722 = vmul.f32 %v2509, 1.442695
    %v2723 = vpow.pop %v2722
    %v2724 = vmul.f32 %v2510, 1.442695
    %v2725 = vpow.pop %v2724
    %v2726 = vmul.f32 %v2511, 1.442695
    %v2727 = vpow.pop %v2726
    %v2728 = vmul.f32 %v2512, 1.442695
    %v2729 = vpow.pop %v2728
    %v2730 = vmul.f32 %v2513, 1.442695
    %v2731 = vpow.pop %v2730
    %v2732 = vmul.f32 %v2514, 1.442695
    %v2733 = vpow.pop %v2732
    %v2734 = vmul.f32 %v2515, 1.442695
    %v2735 = vpow.pop %v2734
    %v2736 = vmul.f32 %v2516, 1.442695
    %v2737 = vpow.pop %v2736
    %v2738 = vmul.f32 %v2517, 1.442695
    %v2739 = vpow.pop %v2738
    %v2740 = vmul.f32 %v2518, 1.442695
    %v2741 = vpow.pop %v2740
    %v2742 = vmul.f32 %v2519, 1.442695
    %v2743 = vpow.pop %v2742
    %v2744 = vmul.f32 %v2520, 1.442695
    %v2745 = vpow.pop %v2744
    %v2746 = vmul.f32 %v2521, 1.442695
    %v2747 = vpow.pop %v2746
    %v2748 = vmul.f32 %v2522, 1.442695
    %v2749 = vpow.pop %v2748
    %v2750 = vmul.f32 %v2523, 1.442695
    %v2751 = vpow.pop %v2750
    %v2752 = vmul.f32 %v2524, 1.442695
    %v2753 = vpow.pop %v2752
    %v2754 = vmul.f32 %v2525, 1.442695
    %v2755 = vpow.pop %v2754
    %v2756 = vmul.f32 %v2526, 1.442695
    %v2757 = vpow.pop %v2756
    %v2758 = vmul.f32 %v2527, 1.442695
    %v2759 = vpow.pop %v2758
    %v2760 = vmul.f32 %v2528, 1.442695
    %v2761 = vpow.pop %v2760
    %v2762 = vmul.f32 %v2529, 1.442695
    %v2763 = vpow.pop %v2762
    %v2764 = vmul.f32 %v2530, 1.442695
    %v2765 = vpow.pop %v2764
    %v2766 = vmul.f32 %v2531, 1.442695
    %v2767 = vpow.pop %v2766
    %v2768 = vmul.f32 %v2532, 1.442695
    %v2769 = vpow.pop %v2768
    %v2770 = vmul.f32 %v2533, 1.442695
    %v2771 = vpow.pop %v2770
    %v2772 = vmul.f32 %v2534, 1.442695
    %v2773 = vpow.pop %v2772
    %v2774 = vmul.f32 %v2535, 1.442695
    %v2775 = vpow.pop %v2774
    %v2776 = vmul.f32 %v2536, 1.442695
    %v2777 = vpow.pop %v2776
    %v2778 = vmul.f32 %v2537, 1.442695
    %v2779 = vpow.pop %v2778
    %v2780 = vmul.f32 %v2538, 1.442695
    %v2781 = vpow.pop %v2780
    %v2782 = vmul.f32 %v2539, 1.442695
    %v2783 = vpow.pop %v2782
    %v2784 = vmul.f32 %v2540, 1.442695
    %v2785 = vpow.pop %v2784
    %v2786 = vmul.f32 %v2541, 1.442695
    %v2787 = vpow.pop %v2786
    %v2788 = vmul.f32 %v2542, 1.442695
    %v2789 = vpow.pop %v2788
    %v2790 = vmul.f32 %v2543, 1.442695
    %v2791 = vpow.pop %v2790
    %v2792 = vmul.f32 %v2544, 1.442695
    %v2793 = vpow.pop %v2792
    %v2794 = vmul.f32 %v2545, 1.442695
    %v2795 = vpow.pop %v2794
    %v2796 = vmul.f32 %v2546, 1.442695
    %v2797 = vpow.pop %v2796
    %v2798 = vmul.f32 %v2547, 1.442695
    %v2799 = vpow.pop %v2798
    %v2800 = vmul.f32 %v2548, 1.442695
    %v2801 = vpow.pop %v2800
    %v2802 = vmul.f32 %v2549, 1.442695
    %v2803 = vpow.pop %v2802
    %v2804 = vmul.f32 %v2550, 1.442695
    %v2805 = vpow.pop %v2804
    %v2806 = vmul.f32 %v2551, 1.442695
    %v2807 = vpow.pop %v2806
    %v2808 = vadd.f32 %v2553, 1.0
    %v2809 = vadd.f32 %v2555, 1.0
    %v2810 = vadd.f32 %v2557, 1.0
    %v2811 = vadd.f32 %v2559, 1.0
    %v2812 = vadd.f32 %v2561, 1.0
    %v2813 = vadd.f32 %v2563, 1.0
    %v2814 = vadd.f32 %v2565, 1.0
    %v2815 = vadd.f32 %v2567, 1.0
    %v2816 = vadd.f32 %v2569, 1.0
    %v2817 = vadd.f32 %v2571, 1.0
    %v2818 = vadd.f32 %v2573, 1.0
    %v2819 = vadd.f32 %v2575, 1.0
    %v2820 = vadd.f32 %v2577, 1.0
    %v2821 = vadd.f32 %v2579, 1.0
    %v2822 = vadd.f32 %v2581, 1.0
    %v2823 = vadd.f32 %v2583, 1.0
    %v2824 = vadd.f32 %v2585, 1.0
    %v2825 = vadd.f32 %v2587, 1.0
    %v2826 = vadd.f32 %v2589, 1.0
    %v2827 = vadd.f32 %v2591, 1.0
    %v2828 = vadd.f32 %v2593, 1.0
    %v2829 = vadd.f32 %v2595, 1.0
    %v2830 = vadd.f32 %v2597, 1.0
    %v2831 = vadd.f32 %v2599, 1.0
    %v2832 = vadd.f32 %v2601, 1.0
    %v2833 = vadd.f32 %v2603, 1.0
    %v2834 = vadd.f32 %v2605, 1.0
    %v2835 = vadd.f32 %v2607, 1.0
    %v2836 = vadd.f32 %v2609, 1.0
    %v2837 = vadd.f32 %v2611, 1.0
    %v2838 = vadd.f32 %v2613, 1.0
    %v2839 = vadd.f32 %v2615, 1.0
    %v2840 = vadd.f32 %v2617, 1.0
    %v2841 = vadd.f32 %v2619, 1.0
    %v2842 = vadd.f32 %v2621, 1.0
    %v2843 = vadd.f32 %v2623, 1.0
    %v2844 = vadd.f32 %v2625, 1.0
    %v2845 = vadd.f32 %v2627, 1.0
    %v2846 = vadd.f32 %v2629, 1.0
    %v2847 = vadd.f32 %v2631, 1.0
    %v2848 = vadd.f32 %v2633, 1.0
    %v2849 = vadd.f32 %v2635, 1.0
    %v2850 = vadd.f32 %v2637, 1.0
    %v2851 = vadd.f32 %v2639, 1.0
    %v2852 = vadd.f32 %v2641, 1.0
    %v2853 = vadd.f32 %v2643, 1.0
    %v2854 = vadd.f32 %v2645, 1.0
    %v2855 = vadd.f32 %v2647, 1.0
    %v2856 = vadd.f32 %v2649, 1.0
    %v2857 = vadd.f32 %v2651, 1.0
    %v2858 = vadd.f32 %v2653, 1.0
    %v2859 = vadd.f32 %v2655, 1.0
    %v2860 = vadd.f32 %v2657, 1.0
    %v2861 = vadd.f32 %v2659, 1.0
    %v2862 = vadd.f32 %v2661, 1.0
    %v2863 = vadd.f32 %v2663, 1.0
    %v2864 = vadd.f32 %v2665, 1.0
    %v2865 = vadd.f32 %v2667, 1.0
    %v2866 = vadd.f32 %v2669, 1.0
    %v2867 = vadd.f32 %v2671, 1.0
    %v2868 = vadd.f32 %v2673, 1.0
    %v2869 = vadd.f32 %v2675, 1.0
    %v2870 = vadd.f32 %v2677, 1.0
    %v2871 = vadd.f32 %v2679, 1.0
    %v2872 = vadd.f32 %v2681, 1.0
    %v2873 = vadd.f32 %v2683, 1.0
    %v2874 = vadd.f32 %v2685, 1.0
    %v2875 = vadd.f32 %v2687, 1.0
    %v2876 = vadd.f32 %v2689, 1.0
    %v2877 = vadd.f32 %v2691, 1.0
    %v2878 = vadd.f32 %v2693, 1.0
    %v2879 = vadd.f32 %v2695, 1.0
    %v2880 = vadd.f32 %v2697, 1.0
    %v2881 = vadd.f32 %v2699, 1.0
    %v2882 = vadd.f32 %v2701, 1.0
    %v2883 = vadd.f32 %v2703, 1.0
    %v2884 = vadd.f32 %v2705, 1.0
    %v2885 = vadd.f32 %v2707, 1.0
    %v2886 = vadd.f32 %v2709, 1.0
    %v2887 = vadd.f32 %v2711, 1.0
    %v2888 = vadd.f32 %v2713, 1.0
    %v2889 = vadd.f32 %v2715, 1.0
    %v2890 = vadd.f32 %v2717, 1.0
    %v2891 = vadd.f32 %v2719, 1.0
    %v2892 = vadd.f32 %v2721, 1.0
    %v2893 = vadd.f32 %v2723, 1.0
    %v2894 = vadd.f32 %v2725, 1.0
    %v2895 = vadd.f32 %v2727, 1.0
    %v2896 = vadd.f32 %v2729, 1.0
    %v2897 = vadd.f32 %v2731, 1.0
    %v2898 = vadd.f32 %v2733, 1.0
    %v2899 = vadd.f32 %v2735, 1.0
    %v2900 = vadd.f32 %v2737, 1.0
    %v2901 = vadd.f32 %v2739, 1.0
    %v2902 = vadd.f32 %v2741, 1.0
    %v2903 = vadd.f32 %v2743, 1.0
    %v2904 = vadd.f32 %v2745, 1.0
    %v2905 = vadd.f32 %v2747, 1.0
    %v2906 = vadd.f32 %v2749, 1.0
    %v2907 = vadd.f32 %v2751, 1.0
    %v2908 = vadd.f32 %v2753, 1.0
    %v2909 = vadd.f32 %v2755, 1.0
    %v2910 = vadd.f32 %v2757, 1.0
    %v2911 = vadd.f32 %v2759, 1.0
    %v2912 = vadd.f32 %v2761, 1.0
    %v2913 = vadd.f32 %v2763, 1.0
    %v2914 = vadd.f32 %v2765, 1.0
    %v2915 = vadd.f32 %v2767, 1.0
    %v2916 = vadd.f32 %v2769, 1.0
    %v2917 = vadd.f32 %v2771, 1.0
    %v2918 = vadd.f32 %v2773, 1.0
    %v2919 = vadd.f32 %v2775, 1.0
    %v2920 = vadd.f32 %v2777, 1.0
    %v2921 = vadd.f32 %v2779, 1.0
    %v2922 = vadd.f32 %v2781, 1.0
    %v2923 = vadd.f32 %v2783, 1.0
    %v2924 = vadd.f32 %v2785, 1.0
    %v2925 = vadd.f32 %v2787, 1.0
    %v2926 = vadd.f32 %v2789, 1.0
    %v2927 = vadd.f32 %v2791, 1.0
    %v2928 = vadd.f32 %v2793, 1.0
    %v2929 = vadd.f32 %v2795, 1.0
    %v2930 = vadd.f32 %v2797, 1.0
    %v2931 = vadd.f32 %v2799, 1.0
    %v2932 = vadd.f32 %v2801, 1.0
    %v2933 = vadd.f32 %v2803, 1.0
    %v2934 = vadd.f32 %v2805, 1.0
    %v2935 = vadd.f32 %v2807, 1.0
    %v2936 = vrcp.pop %v2808
    %v2937 = vrcp.pop %v2809
    %v2938 = vrcp.pop %v2810
    %v2939 = vrcp.pop %v2811
    %v2940 = vrcp.pop %v2812
    %v2941 = vrcp.pop %v2813
    %v2942 = vrcp.pop %v2814
    %v2943 = vrcp.pop %v2815
    %v2944 = vrcp.pop %v2816
    %v2945 = vrcp.pop %v2817
    %v2946 = vrcp.pop %v2818
    %v2947 = vrcp.pop %v2819
    %v2948 = vrcp.pop %v2820
    %v2949 = vrcp.pop %v2821
    %v2950 = vrcp.pop %v2822
    %v2951 = vrcp.pop %v2823
    %v2952 = vrcp.pop %v2824
    %v2953 = vrcp.pop %v2825
    %v2954 = vrcp.pop %v2826
    %v2955 = vrcp.pop %v2827
    %v2956 = vrcp.pop %v2828
    %v2957 = vrcp.pop %v2829
    %v2958 = vrcp.pop %v2830
    %v2959 = vrcp.pop %v2831
    %v2960 = vrcp.pop %v2832
    %v2961 = vrcp.pop %v2833
    %v2962 = vrcp.pop %v2834
    %v2963 = vrcp.pop %v2835
    %v2964 = vrcp.pop %v2836
    %v2965 = vrcp.pop %v2837
    %v2966 = vrcp.pop %v2838
    %v2967 = vrcp.pop %v2839
    %v2968 = vrcp.pop %v2840
    %v2969 = vrcp.pop %v2841
    %v2970 = vrcp.pop %v2842
    %v2971 = vrcp.pop %v2843
    %v2972 = vrcp.pop %v2844
    %v2973 = vrcp.pop %v2845
    %v2974 = vrcp.pop %v2846
    %v2975 = vrcp.pop %v2847
    %v2976 = vrcp.pop %v2848
    %v2977 = vrcp.pop %v2849
    %v2978 = vrcp.pop %v2850
    %v2979 = vrcp.pop %v2851
    %v2980 = vrcp.pop %v2852
    %v2981 = vrcp.pop %v2853
    %v2982 = vrcp.pop %v2854
    %v2983 = vrcp.pop %v2855
    %v2984 = vrcp.pop %v2856
    %v2985 = vrcp.pop %v2857
    %v2986 = vrcp.pop %v2858
    %v2987 = vrcp.pop %v2859
    %v2988 = vrcp.pop %v2860
    %v2989 = vrcp.pop %v2861
    %v2990 = vrcp.pop %v2862
    %v2991 = vrcp.pop %v2863
    %v2992 = vrcp.pop %v2864
    %v2993 = vrcp.pop %v2865
    %v2994 = vrcp.pop %v2866
    %v2995 = vrcp.pop %v2867
    %v2996 = vrcp.pop %v2868
    %v2997 = vrcp.pop %v2869
    %v2998 = vrcp.pop %v2870
    %v2999 = vrcp.pop %v2871
    %v3000 = vrcp.pop %v2872
    %v3001 = vrcp.pop %v2873
    %v3002 = vrcp.pop %v2874
    %v3003 = vrcp.pop %v2875
    %v3004 = vrcp.pop %v2876
    %v3005 = vrcp.pop %v2877
    %v3006 = vrcp.pop %v2878
    %v3007 = vrcp.pop %v2879
    %v3008 = vrcp.pop %v2880
    %v3009 = vrcp.pop %v2881
    %v3010 = vrcp.pop %v2882
    %v3011 = vrcp.pop %v2883
    %v3012 = vrcp.pop %v2884
    %v3013 = vrcp.pop %v2885
    %v3014 = vrcp.pop %v2886
    %v3015 = vrcp.pop %v2887
    %v3016 = vrcp.pop %v2888
    %v3017 = vrcp.pop %v2889
    %v3018 = vrcp.pop %v2890
    %v3019 = vrcp.pop %v2891
    %v3020 = vrcp.pop %v2892
    %v3021 = vrcp.pop %v2893
    %v3022 = vrcp.pop %v2894
    %v3023 = vrcp.pop %v2895
    %v3024 = vrcp.pop %v2896
    %v3025 = vrcp.pop %v2897
    %v3026 = vrcp.pop %v2898
    %v3027 = vrcp.pop %v2899
    %v3028 = vrcp.pop %v2900
    %v3029 = vrcp.pop %v2901
    %v3030 = vrcp.pop %v2902
    %v3031 = vrcp.pop %v2903
    %v3032 = vrcp.pop %v2904
    %v3033 = vrcp.pop %v2905
    %v3034 = vrcp.pop %v2906
    %v3035 = vrcp.pop %v2907
    %v3036 = vrcp.pop %v2908
    %v3037 = vrcp.pop %v2909
    %v3038 = vrcp.pop %v2910
    %v3039 = vrcp.pop %v2911
    %v3040 = vrcp.pop %v2912
    %v3041 = vrcp.pop %v2913
    %v3042 = vrcp.pop %v2914
    %v3043 = vrcp.pop %v2915
    %v3044 = vrcp.pop %v2916
    %v3045 = vrcp.pop %v2917
    %v3046 = vrcp.pop %v2918
    %v3047 = vrcp.pop %v2919
    %v3048 = vrcp.pop %v2920
    %v3049 = vrcp.pop %v2921
    %v3050 = vrcp.pop %v2922
    %v3051 = vrcp.pop %v2923
    %v3052 = vrcp.pop %v2924
    %v3053 = vrcp.pop %v2925
    %v3054 = vrcp.pop %v2926
    %v3055 = vrcp.pop %v2927
    %v3056 = vrcp.pop %v2928
    %v3057 = vrcp.pop %v2929
    %v3058 = vrcp.pop %v2930
    %v3059 = vrcp.pop %v2931
    %v3060 = vrcp.pop %v2932
    %v3061 = vrcp.pop %v2933
    %v3062 = vrcp.pop %v2934
    %v3063 = vrcp.pop %v2935
    %v3064 = vmul.f32 %v1914, %v2936
    %v3065 = vmul.f32 %v1917, %v2937
    %v3066 = vmul.f32 %v1922, %v2938
    %v3067 = vmul.f32 %v1925, %v2939
    %v3068 = vmul.f32 %v1930, %v2940
    %v3069 = vmul.f32 %v1933, %v2941
    %v3070 = vmul.f32 %v1938, %v2942
    %v3071 = vmul.f32 %v1941, %v2943
    %v3072 = vmul.f32 %v1946, %v2944
    %v3073 = vmul.f32 %v1949, %v2945
    %v3074 = vmul.f32 %v1954, %v2946
    %v3075 = vmul.f32 %v1957, %v2947
    %v3076 = vmul.f32 %v1962, %v2948
    %v3077 = vmul.f32 %v1965, %v2949
    %v3078 = vmul.f32 %v1970, %v2950
    %v3079 = vmul.f32 %v1973, %v2951
    %v3080 = vmul.f32 %v1978, %v2952
    %v3081 = vmul.f32 %v1981, %v2953
    %v3082 = vmul.f32 %v1986, %v2954
    %v3083 = vmul.f32 %v1989, %v2955
    %v3084 = vmul.f32 %v1994, %v2956
    %v3085 = vmul.f32 %v1997, %v2957
    %v3086 = vmul.f32 %v2002, %v2958
    %v3087 = vmul.f32 %v2005, %v2959
    %v3088 = vmul.f32 %v2010, %v2960
    %v3089 = vmul.f32 %v2013, %v2961
    %v3090 = vmul.f32 %v2018, %v2962
    %v3091 = vmul.f32 %v2021, %v2963
    %v3092 = vmul.f32 %v2026, %v2964
    %v3093 = vmul.f32 %v2029, %v2965
    %v3094 = vmul.f32 %v2034, %v2966
    %v3095 = vmul.f32 %v2037, %v2967
    %v3096 = vmul.f32 %v2042, %v2968
    %v3097 = vmul.f32 %v2045, %v2969
    %v3098 = vmul.f32 %v2050, %v2970
    %v3099 = vmul.f32 %v2053, %v2971
    %v3100 = vmul.f32 %v2058, %v2972
    %v3101 = vmul.f32 %v2061, %v2973
    %v3102 = vmul.f32 %v2066, %v2974
    %v3103 = vmul.f32 %v2069, %v2975
    %v3104 = vmul.f32 %v2074, %v2976
    %v3105 = vmul.f32 %v2077, %v2977
    %v3106 = vmul.f32 %v2082, %v2978
    %v3107 = vmul.f32 %v2085, %v2979
    %v3108 = vmul.f32 %v2090, %v2980
    %v3109 = vmul.f32 %v2093, %v2981
    %v3110 = vmul.f32 %v2098, %v2982
    %v3111 = vmul.f32 %v2101, %v2983
    %v3112 = vmul.f32 %v2106, %v2984
    %v3113 = vmul.f32 %v2109, %v2985
    %v3114 = vmul.f32 %v2114, %v2986
    %v3115 = vmul.f32 %v2117, %v2987
    %v3116 = vmul.f32 %v2122, %v2988
    %v3117 = vmul.f32 %v2125, %v2989
    %v3118 = vmul.f32 %v2130, %v2990
    %v3119 = vmul.f32 %v2133, %v2991
    %v3120 = vmul.f32 %v2138, %v2992
    %v3121 = vmul.f32 %v2141, %v2993
    %v3122 = vmul.f32 %v2146, %v2994
    %v3123 = vmul.f32 %v2149, %v2995
    %v3124 = vmul.f32 %v2154, %v2996
    %v3125 = vmul.f32 %v2157, %v2997
    %v3126 = vmul.f32 %v2162, %v2998
    %v3127 = vmul.f32 %v2165, %v2999
    %v3128 = vmul.f32 %v2170, %v3000
    %v3129 = vmul.f32 %v2173, %v3001
    %v3130 = vmul.f32 %v2178, %v3002
    %v3131 = vmul.f32 %v2181, %v3003
    %v3132 = vmul.f32 %v2186, %v3004
    %v3133 = vmul.f32 %v2189, %v3005
    %v3134 = vmul.f32 %v2194, %v3006
    %v3135 = vmul.f32 %v2197, %v3007
    %v3136 = vmul.f32 %v2202, %v3008
    %v3137 = vmul.f32 %v2205, %v3009
    %v3138 = vmul.f32 %v2210, %v3010
    %v3139 = vmul.f32 %v2213, %v3011
    %v3140 = vmul.f32 %v2218, %v3012
    %v3141 = vmul.f32 %v2221, %v3013
    %v3142 = vmul.f32 %v2226, %v3014
    %v3143 = vmul.f32 %v2229, %v3015
    %v3144 = vmul.f32 %v2234, %v3016
    %v3145 = vmul.f32 %v2237, %v3017
    %v3146 = vmul.f32 %v2242, %v3018
    %v3147 = vmul.f32 %v2245, %v3019
    %v3148 = vmul.f32 %v2250, %v3020
    %v3149 = vmul.f32 %v2253, %v3021
    %v3150 = vmul.f32 %v2258, %v3022
    %v3151 = vmul.f32 %v2261, %v3023
    %v3152 = vmul.f32 %v2266, %v3024
    %v3153 = vmul.f32 %v2269, %v3025
    %v3154 = vmul.f32 %v2274, %v3026
    %v3155 = vmul.f32 %v2277, %v3027
    %v3156 = vmul.f32 %v2282, %v3028
    %v3157 = vmul.f32 %v2285, %v3029
    %v3158 = vmul.f32 %v2290, %v3030
    %v3159 = vmul.f32 %v2293, %v3031
    %v3160 = vmul.f32 %v2298, %v3032
    %v3161 = vmul.f32 %v2301, %v3033
    %v3162 = vmul.f32 %v2306, %v3034
    %v3163 = vmul.f32 %v2309, %v3035
    %v3164 = vmul.f32 %v2314, %v3036
    %v3165 = vmul.f32 %v2317, %v3037
    %v3166 = vmul.f32 %v2322, %v3038
    %v3167 = vmul.f32 %v2325, %v3039
    %v3168 = vmul.f32 %v2330, %v3040
    %v3169 = vmul.f32 %v2333, %v3041
    %v3170 = vmul.f32 %v2338, %v3042
    %v3171 = vmul.f32 %v2341, %v3043
    %v3172 = vmul.f32 %v2346, %v3044
    %v3173 = vmul.f32 %v2349, %v3045
    %v3174 = vmul.f32 %v2354, %v3046
    %v3175 = vmul.f32 %v2357, %v3047
    %v3176 = vmul.f32 %v2362, %v3048
    %v3177 = vmul.f32 %v2365, %v3049
    %v3178 = vmul.f32 %v2370, %v3050
    %v3179 = vmul.f32 %v2373, %v3051
    %v3180 = vmul.f32 %v2378, %v3052
    %v3181 = vmul.f32 %v2381, %v3053
    %v3182 = vmul.f32 %v2386, %v3054
    %v3183 = vmul.f32 %v2389, %v3055
    %v3184 = vmul.f32 %v2394, %v3056
    %v3185 = vmul.f32 %v2397, %v3057
    %v3186 = vmul.f32 %v2402, %v3058
    %v3187 = vmul.f32 %v2405, %v3059
    %v3188 = vmul.f32 %v2410, %v3060
    %v3189 = vmul.f32 %v2413, %v3061
    %v3190 = vmul.f32 %v2418, %v3062
    %v3191 = vmul.f32 %v2421, %v3063
    %v3192 = vpack.c.bf16 %v3065, %v3064
    %v3193 = vpack.c.bf16 %v3067, %v3066
    %v3194 = vpack.c.bf16 %v3069, %v3068
    %v3195 = vpack.c.bf16 %v3071, %v3070
    %v3196 = vpack.c.bf16 %v3073, %v3072
    %v3197 = vpack.c.bf16 %v3075, %v3074
    %v3198 = vpack.c.bf16 %v3077, %v3076
    %v3199 = vpack.c.bf16 %v3079, %v3078
    %v3200 = vpack.c.bf16 %v3081, %v3080
    %v3201 = vpack.c.bf16 %v3083, %v3082
    %v3202 = vpack.c.bf16 %v3085, %v3084
    %v3203 = vpack.c.bf16 %v3087, %v3086
    %v3204 = vpack.c.bf16 %v3089, %v3088
    %v3205 = vpack.c.bf16 %v3091, %v3090
    %v3206 = vpack.c.bf16 %v3093, %v3092
    %v3207 = vpack.c.bf16 %v3095, %v3094
    %v3208 = vpack.c.bf16 %v3097, %v3096
    %v3209 = vpack.c.bf16 %v3099, %v3098
    %v3210 = vpack.c.bf16 %v3101, %v3100
    %v3211 = vpack.c.bf16 %v3103, %v3102
    %v3212 = vpack.c.bf16 %v3105, %v3104
    %v3213 = vpack.c.bf16 %v3107, %v3106
    %v3214 = vpack.c.bf16 %v3109, %v3108
    %v3215 = vpack.c.bf16 %v3111, %v3110
    %v3216 = vpack.c.bf16 %v3113, %v3112
    %v3217 = vpack.c.bf16 %v3115, %v3114
    %v3218 = vpack.c.bf16 %v3117, %v3116
    %v3219 = vpack.c.bf16 %v3119, %v3118
    %v3220 = vpack.c.bf16 %v3121, %v3120
    %v3221 = vpack.c.bf16 %v3123, %v3122
    %v3222 = vpack.c.bf16 %v3125, %v3124
    %v3223 = vpack.c.bf16 %v3127, %v3126
    %v3224 = vpack.c.bf16 %v3129, %v3128
    %v3225 = vpack.c.bf16 %v3131, %v3130
    %v3226 = vpack.c.bf16 %v3133, %v3132
    %v3227 = vpack.c.bf16 %v3135, %v3134
    %v3228 = vpack.c.bf16 %v3137, %v3136
    %v3229 = vpack.c.bf16 %v3139, %v3138
    %v3230 = vpack.c.bf16 %v3141, %v3140
    %v3231 = vpack.c.bf16 %v3143, %v3142
    %v3232 = vpack.c.bf16 %v3145, %v3144
    %v3233 = vpack.c.bf16 %v3147, %v3146
    %v3234 = vpack.c.bf16 %v3149, %v3148
    %v3235 = vpack.c.bf16 %v3151, %v3150
    %v3236 = vpack.c.bf16 %v3153, %v3152
    %v3237 = vpack.c.bf16 %v3155, %v3154
    %v3238 = vpack.c.bf16 %v3157, %v3156
    %v3239 = vpack.c.bf16 %v3159, %v3158
    %v3240 = vpack.c.bf16 %v3161, %v3160
    %v3241 = vpack.c.bf16 %v3163, %v3162
    %v3242 = vpack.c.bf16 %v3165, %v3164
    %v3243 = vpack.c.bf16 %v3167, %v3166
    %v3244 = vpack.c.bf16 %v3169, %v3168
    %v3245 = vpack.c.bf16 %v3171, %v3170
    %v3246 = vpack.c.bf16 %v3173, %v3172
    %v3247 = vpack.c.bf16 %v3175, %v3174
    %v3248 = vpack.c.bf16 %v3177, %v3176
    %v3249 = vpack.c.bf16 %v3179, %v3178
    %v3250 = vpack.c.bf16 %v3181, %v3180
    %v3251 = vpack.c.bf16 %v3183, %v3182
    %v3252 = vpack.c.bf16 %v3185, %v3184
    %v3253 = vpack.c.bf16 %v3187, %v3186
    %v3254 = vpack.c.bf16 %v3189, %v3188
    %v3255 = vpack.c.bf16 %v3191, %v3190
    %v3256 = vld [vmem:[#allocation2] sm:$0xff]
    %v3257 = vld [vmem:[%s3] sm:$0xff]
    %v3258 = vld [vmem:[%s3 + $0x8] sm:$0xff]
    %v3259 = vld [vmem:[%s3 + $0x10] sm:$0xff]
    %v3260 = vld [vmem:[%s3 + $0x18] sm:$0xff]
    %v3265 = vunpack.c.l.b16 %v3257
    %v3266 = vunpack.c.h.b16 %v3257
    %v3267 = vunpack.c.l.b16 %v3258
    %v3268 = vunpack.c.h.b16 %v3258
    %v3269 = vunpack.c.l.b16 %v3259
    %v3270 = vunpack.c.h.b16 %v3259
    %v3271 = vunpack.c.l.b16 %v3260
    %v3272 = vunpack.c.h.b16 %v3260
    %v3273 = vpack.c.b16 %v3265, %v3265
    %v3274 = vpack.c.b16 %v3266, %v3266
    %v3275 = vpack.c.b16 %v3267, %v3267
    %v3276 = vpack.c.b16 %v3268, %v3268
    %v3277 = vpack.c.b16 %v3269, %v3269
    %v3278 = vpack.c.b16 %v3270, %v3270
    %v3279 = vpack.c.b16 %v3271, %v3271
    %v3280 = vpack.c.b16 %v3272, %v3272
    %3289 = vmatprep.subr.bf16.mxu0 0
    %3290 = vmatpush1.bf16.msra.mxu0 %v3192
    %3291 = vmatprep.subr.bf16.mxu0 0
    %3292 = vmatpush1.bf16.msra.mxu0 %v3193
    %3293 = vmatprep.subr.bf16.mxu0 0
    %3294 = vmatpush1.bf16.msra.mxu0 %v3194
    %3295 = vmatprep.subr.bf16.mxu0 0
    %3296 = vmatpush1.bf16.msra.mxu0 %v3195
    %3297 = vmatprep.subr.bf16.mxu0 0
    %3298 = vmatpush1.bf16.msra.mxu0 %v3196
    %3299 = vmatprep.subr.bf16.mxu0 0
    %3300 = vmatpush1.bf16.msra.mxu0 %v3197
    %3301 = vmatprep.subr.bf16.mxu0 0
    %3302 = vmatpush1.bf16.msra.mxu0 %v3198
    %3303 = vmatprep.subr.bf16.mxu0 0
    %3304 = vmatpush1.bf16.msra.mxu0 %v3199
    %3305 = vmatprep.subr.bf16.mxu0 0
    %3306 = vmatpush1.bf16.msra.mxu0 %v3200
    %3307 = vmatprep.subr.bf16.mxu0 0
    %3308 = vmatpush1.bf16.msra.mxu0 %v3201
    %3309 = vmatprep.subr.bf16.mxu0 0
    %3310 = vmatpush1.bf16.msra.mxu0 %v3202
    %3311 = vmatprep.subr.bf16.mxu0 0
    %3312 = vmatpush1.bf16.msra.mxu0 %v3203
    %3313 = vmatprep.subr.bf16.mxu0 0
    %3314 = vmatpush1.bf16.msra.mxu0 %v3204
    %3315 = vmatprep.subr.bf16.mxu0 0
    %3316 = vmatpush1.bf16.msra.mxu0 %v3205
    %3317 = vmatprep.subr.bf16.mxu0 0
    %3318 = vmatpush1.bf16.msra.mxu0 %v3206
    %3319 = vmatprep.subr.bf16.mxu0 0
    %3320 = vmatpush1.bf16.msra.mxu0 %v3207
    %3321 = vmatprep.mubr.bf16.mxu0 %v3274
    %3322 = vmatmul.mubr.bf16.gmra.mrb[0].mxu0 %v3273
    %v3323 = vpop.f32.mrb[0].mxu0
    %v3324 = vadd.f32 0.0, %v3323
    %v3325 = vpop.f32.mrb[0].mxu0
    %v3326 = vpop.f32.mrb[0].mxu0
    %v3327 = vpop.f32.mrb[0].mxu0
    %3328 = vdwg.mxu0
    %3329 = vmatprep.subr.bf16.mxu0 0
    %3330 = vmatpush1.bf16.msra.mxu0 %v3208
    %3331 = vmatprep.subr.bf16.mxu0 0
    %3332 = vmatpush1.bf16.msra.mxu0 %v3209
    %3333 = vmatprep.subr.bf16.mxu0 0
    %3334 = vmatpush1.bf16.msra.mxu0 %v3210
    %3335 = vmatprep.subr.bf16.mxu0 0
    %3336 = vmatpush1.bf16.msra.mxu0 %v3211
    %3337 = vmatprep.subr.bf16.mxu0 0
    %3338 = vmatpush1.bf16.msra.mxu0 %v3212
    %3339 = vmatprep.subr.bf16.mxu0 0
    %3340 = vmatpush1.bf16.msra.mxu0 %v3213
    %3341 = vmatprep.subr.bf16.mxu0 0
    %3342 = vmatpush1.bf16.msra.mxu0 %v3214
    %3343 = vmatprep.subr.bf16.mxu0 0
    %3344 = vmatpush1.bf16.msra.mxu0 %v3215
    %3345 = vmatprep.subr.bf16.mxu0 0
    %3346 = vmatpush1.bf16.msra.mxu0 %v3216
    %3347 = vmatprep.subr.bf16.mxu0 0
    %3348 = vmatpush1.bf16.msra.mxu0 %v3217
    %3349 = vmatprep.subr.bf16.mxu0 0
    %3350 = vmatpush1.bf16.msra.mxu0 %v3218
    %3351 = vmatprep.subr.bf16.mxu0 0
    %3352 = vmatpush1.bf16.msra.mxu0 %v3219
    %3353 = vmatprep.subr.bf16.mxu0 0
    %3354 = vmatpush1.bf16.msra.mxu0 %v3220
    %3355 = vmatprep.subr.bf16.mxu0 0
    %3356 = vmatpush1.bf16.msra.mxu0 %v3221
    %3357 = vmatprep.subr.bf16.mxu0 0
    %3358 = vmatpush1.bf16.msra.mxu0 %v3222
    %3359 = vmatprep.subr.bf16.mxu0 0
    %3360 = vmatpush1.bf16.msra.mxu0 %v3223
    %3361 = vmatprep.mubr.bf16.mxu0 %v3276
    %3362 = vmatmul.mubr.bf16.gmra.mrb[0].mxu0 %v3275
    %v3363 = vpop.f32.mrb[0].mxu0
    %v3364 = vadd.f32 %v3324, %v3363
    %v3365 = vpop.f32.mrb[0].mxu0
    %v3366 = vpop.f32.mrb[0].mxu0
    %v3367 = vpop.f32.mrb[0].mxu0
    %3368 = vdwg.mxu0
    %3369 = vmatprep.subr.bf16.mxu0 0
    %3370 = vmatpush1.bf16.msra.mxu0 %v3224
    %3371 = vmatprep.subr.bf16.mxu0 0
    %3372 = vmatpush1.bf16.msra.mxu0 %v3225
    %3373 = vmatprep.subr.bf16.mxu0 0
    %3374 = vmatpush1.bf16.msra.mxu0 %v3226
    %3375 = vmatprep.subr.bf16.mxu0 0
    %3376 = vmatpush1.bf16.msra.mxu0 %v3227
    %3377 = vmatprep.subr.bf16.mxu0 0
    %3378 = vmatpush1.bf16.msra.mxu0 %v3228
    %3379 = vmatprep.subr.bf16.mxu0 0
    %3380 = vmatpush1.bf16.msra.mxu0 %v3229
    %3381 = vmatprep.subr.bf16.mxu0 0
    %3382 = vmatpush1.bf16.msra.mxu0 %v3230
    %3383 = vmatprep.subr.bf16.mxu0 0
    %3384 = vmatpush1.bf16.msra.mxu0 %v3231
    %3385 = vmatprep.subr.bf16.mxu0 0
    %3386 = vmatpush1.bf16.msra.mxu0 %v3232
    %3387 = vmatprep.subr.bf16.mxu0 0
    %3388 = vmatpush1.bf16.msra.mxu0 %v3233
    %3389 = vmatprep.subr.bf16.mxu0 0
    %3390 = vmatpush1.bf16.msra.mxu0 %v3234
    %3391 = vmatprep.subr.bf16.mxu0 0
    %3392 = vmatpush1.bf16.msra.mxu0 %v3235
    %3393 = vmatprep.subr.bf16.mxu0 0
    %3394 = vmatpush1.bf16.msra.mxu0 %v3236
    %3395 = vmatprep.subr.bf16.mxu0 0
    %3396 = vmatpush1.bf16.msra.mxu0 %v3237
    %3397 = vmatprep.subr.bf16.mxu0 0
    %3398 = vmatpush1.bf16.msra.mxu0 %v3238
    %3399 = vmatprep.subr.bf16.mxu0 0
    %3400 = vmatpush1.bf16.msra.mxu0 %v3239
    %3401 = vmatprep.mubr.bf16.mxu0 %v3278
    %3402 = vmatmul.mubr.bf16.gmra.mrb[0].mxu0 %v3277
    %v3403 = vpop.f32.mrb[0].mxu0
    %v3404 = vadd.f32 %v3364, %v3403
    %v3405 = vpop.f32.mrb[0].mxu0
    %v3406 = vpop.f32.mrb[0].mxu0
    %v3407 = vpop.f32.mrb[0].mxu0
    %3408 = vdwg.mxu0
    %3409 = vmatprep.subr.bf16.mxu0 0
    %3410 = vmatpush1.bf16.msra.mxu0 %v3240
    %3411 = vmatprep.subr.bf16.mxu0 0
    %3412 = vmatpush1.bf16.msra.mxu0 %v3241
    %3413 = vmatprep.subr.bf16.mxu0 0
    %3414 = vmatpush1.bf16.msra.mxu0 %v3242
    %3415 = vmatprep.subr.bf16.mxu0 0
    %3416 = vmatpush1.bf16.msra.mxu0 %v3243
    %3417 = vmatprep.subr.bf16.mxu0 0
    %3418 = vmatpush1.bf16.msra.mxu0 %v3244
    %3419 = vmatprep.subr.bf16.mxu0 0
    %3420 = vmatpush1.bf16.msra.mxu0 %v3245
    %3421 = vmatprep.subr.bf16.mxu0 0
    %3422 = vmatpush1.bf16.msra.mxu0 %v3246
    %3423 = vmatprep.subr.bf16.mxu0 0
    %3424 = vmatpush1.bf16.msra.mxu0 %v3247
    %3425 = vmatprep.subr.bf16.mxu0 0
    %3426 = vmatpush1.bf16.msra.mxu0 %v3248
    %3427 = vmatprep.subr.bf16.mxu0 0
    %3428 = vmatpush1.bf16.msra.mxu0 %v3249
    %3429 = vmatprep.subr.bf16.mxu0 0
    %3430 = vmatpush1.bf16.msra.mxu0 %v3250
    %3431 = vmatprep.subr.bf16.mxu0 0
    %3432 = vmatpush1.bf16.msra.mxu0 %v3251
    %3433 = vmatprep.subr.bf16.mxu0 0
    %3434 = vmatpush1.bf16.msra.mxu0 %v3252
    %3435 = vmatprep.subr.bf16.mxu0 0
    %3436 = vmatpush1.bf16.msra.mxu0 %v3253
    %3437 = vmatprep.subr.bf16.mxu0 0
    %3438 = vmatpush1.bf16.msra.mxu0 %v3254
    %3439 = vmatprep.subr.bf16.mxu0 0
    %3440 = vmatpush1.bf16.msra.mxu0 %v3255
    %3441 = vmatprep.mubr.bf16.mxu0 %v3280
    %3442 = vmatmul.mubr.bf16.gmra.mrb[0].mxu0 %v3279
    %v3443 = vpop.f32.mrb[0].mxu0
    %v3444 = vadd.f32 %v3404, %v3443
    %v3445 = vpop.f32.mrb[0].mxu0
    %v3446 = vpop.f32.mrb[0].mxu0
    %v3447 = vpop.f32.mrb[0].mxu0
    %3448 = vdwg.mxu0
    %v3449 = vadd.f32 %v3256, %v3444
    %3450 = vst [vmem:[#allocation2] sm:$0xff] %v3449
    // Predicated region
    $region26: #{tpu_custom_call.1} parent=1 // pred_check
      _
    $region27: #{tpu_custom_call.1} parent=1 // pred_check_branch
      %3452 = sbr.rel (0) target = $region29
    $region28: #{tpu_custom_call.1} parent=1 // pred_region
      %s3454 = ssub.s32 128, 128
      %3455 = vsyncadd [#allocation3], %s3454
      %s3457 = sshll.u32 [#allocation2], 4
      %s3458 = int_to_ptr.vmem [resolvable:$true] %s3457
      %3460 = dma.vmem_to_hbm [thread:$0]  %s3458, 128, %s5, [#allocation3]
    $region29: #{tpu_custom_call.1} parent=1 // pred_fallthru
      _
    // Predicated region
    $region30: #{tpu_custom_call.1} parent=1 // pred_check
      _
    $region31: #{tpu_custom_call.1} parent=1 // pred_check_branch
      %3462 = sbr.rel (0) target = $region33
    $region32: #{tpu_custom_call.1} parent=1 // pred_region
      %3463 = dma.done [#allocation3], 128
    $region33: #{tpu_custom_call.1} parent=1 // pred_fallthru
      _
    %3464 = vsyncpa [#allocation3], 1

</llo_original>
